<compile_context>
chip_gen: v7x
topology: tpu7x:2x2x1
jax: 0.10.0
libtpu: 0.0.40
codegen_flags: <defaults>
</compile_context>

<pallas_src>
import jax
import jax.numpy as jnp
from jax.experimental import pallas as pl
from jax.experimental.pallas import tpu as pltpu

_BN_EPS = 1e-5


# ----------------------------- in-kernel helpers -----------------------------
def _act(y, act):
    if act == "RE":                       # nn.ReLU
        return jnp.maximum(y, 0.0)
    if act == "HS":                       # ReLU6(y + 3) / 6 * y  (hard-swish)
        return jnp.clip(y + 3.0, 0.0, 6.0) * (1.0 / 6.0) * y
    return y


def _bspec_full(shape):
    """BlockSpec covering the whole (small) array, re-used at every grid step."""
    n = len(shape)
    return pl.BlockSpec(shape, lambda b, _n=n: (0,) * _n)


def _vmem_limit_bytes():
    # Raise the scoped-VMEM limit above the 16/32 MiB defaults, but keep headroom
    # for v7x (64 MiB physical per TensorCore).
    try:
        cap = pltpu.get_tpu_info().vmem_capacity_bytes
        return int(min(100 * 1024 * 1024, cap * 3 // 4))
    except Exception:
        return 48 * 1024 * 1024


# ------------------------------ fused bneck kernel ---------------------------
def _make_bneck_kernel(*, K, stride, pad, H, W, Ho, Wo, E, F, act, se, use_connect):
    L = H * W
    head = pad * (W + 1)                  # flat offset of the interior block
    tail = F - head - L
    fast = (stride == 1) and (Ho == H) and (Wo == W)   # 'same' depthwise, stride 1

    def kernel(*refs):
        if se:
            (x_ref, wexp_ref, sh1_ref, wdw_ref, sh2_ref, cm_ref,
             wse1_ref, bse1_ref, wse2_ref, bse2_ref,
             wprj_ref, sh3_ref, o_ref, yp_ref) = refs
        else:
            (x_ref, wexp_ref, sh1_ref, wdw_ref, sh2_ref, cm_ref,
             wprj_ref, sh3_ref, o_ref, yp_ref) = refs

        # ---- 1) 1x1 expand conv (BN1 scale folded into weights) + shift + act ----
        ye = jnp.dot(wexp_ref[...], x_ref[...],
                     preferred_element_type=jnp.float32)            # (E, H*W)
        ye = _act(ye + sh1_ref[...], act)

        # ---- 2) depthwise KxK conv (BN2 scale folded) on a flat padded buffer ----
        # Buffer layout: [head zeros | row0 | row1 | ... | row H-1 | tail zeros],
        # row stride W (vertical zero halo only; horizontal wrap handled by masks).
        if head > 0:
            yp_ref[:, 0:head] = jnp.zeros((E, head), jnp.float32)
        yp_ref[:, head:head + L] = ye
        if tail > 0:
            yp_ref[:, head + L:F] = jnp.zeros((E, tail), jnp.float32)

        ypv = yp_ref[...]                                            # (E, F)
        wdw = wdw_ref[...]                                           # (E, K*K)
        cm = cm_ref[...]                                             # (K, H*W)
        acc = None
        for kw in range(K):                                          # static unroll
            inner = None
            for kh in range(K):
                off = kh * W + kw                                    # flat tap shift
                t = kh * K + kw
                tap = ypv[:, off:off + L] * wdw[:, t:t + 1]
                inner = tap if inner is None else inner + tap
            if kw != pad:                 # column mask cancels out-of-row wrap reads
                inner = inner * cm[kw:kw + 1, :]
            acc = inner if acc is None else acc + inner

        if fast:
            y = acc                                                  # (E, Ho*Wo)
        else:
            # TODO(synk): stride>1 / non-'same' padding path is unoptimized
            # (per-row strided slices + lane concatenation) and not exercised here.
            rows = []
            for oi in range(Ho):
                start = oi * stride * W
                if stride == 1:
                    rows.append(acc[:, start:start + Wo])
                else:
                    rows.append(acc[:, start:start + (Wo - 1) * stride + 1:stride])
            y = rows[0] if len(rows) == 1 else jnp.concatenate(rows, axis=1)
        y = y + sh2_ref[...]                                         # BN2 shift (E,1)

        # ---- 3) squeeze-and-excite: (E,1) gate only, applied in VMEM -------------
        if se:
            pooled = jnp.sum(y, axis=1, keepdims=True) * (1.0 / (Ho * Wo))   # (E,1)
            h = jnp.dot(wse1_ref[...], pooled,
                        preferred_element_type=jnp.float32) + bse1_ref[...]
            h = jnp.maximum(h, 0.0)                                          # ReLU
            g = jnp.dot(wse2_ref[...], h,
                        preferred_element_type=jnp.float32) + bse2_ref[...]
            g = jnp.clip(0.2 * g + 0.5, 0.0, 1.0)   # hard_sigmoid (slope 0.2, per module)
            y = y * g

        # ---- 4) 1x1 project conv (BN3 scale folded) + shift + act (+ residual) ---
        z = jnp.dot(wprj_ref[...], y,
                    preferred_element_type=jnp.float32)              # (Cout, Ho*Wo)
        z = _act(z + sh3_ref[...], act)
        if use_connect:
            z = z + x_ref[...]            # re-read x here: short live range
        o_ref[...] = z

    return kernel


# ------------------------------ params & BN folding --------------------------
def fold_bn(gamma, beta, mean, var, conv_bias=None):
    scale = gamma / jnp.sqrt(var + _BN_EPS)
    shift = beta - mean * scale
    if conv_bias is not None:
        shift = shift + conv_bias * scale
    return scale, shift                     # 1-D (C,)


def init_params(key, in_ch, out_ch, exp, k, se):
    keys = iter(jax.random.split(key, 32))

    def rnd(shape, scale=0.1):
        return (scale * jax.random.normal(next(keys), shape)).astype(jnp.float32)

    p = {
        "w_exp": rnd((in_ch, exp)),      # 1x1 expand conv, bias=False
        "w_dw": rnd((k, k, exp)),        # depthwise weights (K, K, E)
        "b_dw": rnd((exp,)),
        "w_proj": rnd((exp, out_ch)),    # 1x1 project conv (bias=True)
        "b_proj": rnd((out_ch,)),
    }
    if se:
        p["w_se1"] = rnd((exp, exp // 4))
        p["b_se1"] = rnd((exp // 4,))
        p["w_se2"] = rnd((exp // 4, exp))
        p["b_se2"] = rnd((exp,))
    for name, c in (("bn1", exp), ("bn2", exp), ("bn3", out_ch)):
        p[name + "_g"] = 1.0 + rnd((c,))
        p[name + "_b"] = rnd((c,))
        p[name + "_m"] = rnd((c,))
        p[name + "_v"] = jnp.abs(rnd((c,), scale=1.0)) + 0.5
    return p


# ---------------------------------- forward -----------------------------------
def bneck_forward(x_nchw, p, *, kernel_size, stride, padding, HS, RE, SE,
                  in_ch, out_ch, exp):
    B, Cin, H, W = x_nchw.shape
    K, pad = kernel_size, padding
    assert 2 * pad <= K - 1, "flat-tap depthwise assumes pad <= (K-1)/2 (MobileNet-style)"
    Ho = (H + 2 * pad - K) // stride + 1
    Wo = (W + 2 * pad - K) // stride + 1
    use_connect = (stride == 1) and (in_ch == out_ch)
    act = "RE" if RE else ("HS" if HS else "none")
    L = H * W
    F = (H + K - 1) * W + (K - 1)        # flat padded length (vertical halo + slack)

    # NCHW kept as-is; spatial flattened onto the lane axis (no wrapper transposes).
    x = x_nchw.reshape(B, Cin, L).astype(jnp.float32)

    # Fold BN scales into the conv weights; only shifts go into the kernel.
    scale1, shift1 = fold_bn(p["bn1_g"], p["bn1_b"], p["bn1_m"], p["bn1_v"])
    scale2, shift2 = fold_bn(p["bn2_g"], p["bn2_b"], p["bn2_m"], p["bn2_v"], p["b_dw"])
    scale3, shift3 = fold_bn(p["bn3_g"], p["bn3_b"], p["bn3_m"], p["bn3_v"], p["b_proj"])

    w_expT = jnp.transpose(p["w_exp"] * scale1[None, :], (1, 0))                # (E, Cin)
    w_dw_f = jnp.transpose((p["w_dw"] * scale2[None, None, :]).reshape(K * K, exp),
                           (1, 0))                                              # (E, K*K)
    w_prjT = jnp.transpose(p["w_proj"] * scale3[None, :], (1, 0))               # (Cout, E)
    sh1 = shift1.reshape(exp, 1)
    sh2 = shift2.reshape(exp, 1)
    sh3 = shift3.reshape(out_ch, 1)

    # Per-kw column masks cancelling horizontal row-wrap in the flat tap reads.
    cols = jnp.arange(L, dtype=jnp.int32) % W
    kws = jnp.arange(K, dtype=jnp.int32)[:, None]
    c = cols[None, :] + kws - pad
    cmask = ((c >= 0) & (c < W)).astype(jnp.float32)                            # (K, L)

    args = [x, w_expT, sh1, w_dw_f, sh2, cmask]
    in_specs = [
        pl.BlockSpec((None, Cin, L), lambda b: (b, 0, 0)),
        _bspec_full(w_expT.shape), _bspec_full(sh1.shape),
        _bspec_full(w_dw_f.shape), _bspec_full(sh2.shape),
        _bspec_full(cmask.shape),
    ]
    if SE:
        w_se1T = jnp.transpose(p["w_se1"], (1, 0))        # (E//4, E)
        b_se1c = p["b_se1"].reshape(-1, 1)                # (E//4, 1)
        w_se2T = jnp.transpose(p["w_se2"], (1, 0))        # (E, E//4)
        b_se2c = p["b_se2"].reshape(-1, 1)                # (E, 1)
        args += [w_se1T, b_se1c, w_se2T, b_se2c]
        in_specs += [_bspec_full(w_se1T.shape), _bspec_full(b_se1c.shape),
                     _bspec_full(w_se2T.shape), _bspec_full(b_se2c.shape)]
    args += [w_prjT, sh3]
    in_specs += [_bspec_full(w_prjT.shape), _bspec_full(sh3.shape)]

    kernel = _make_bneck_kernel(K=K, stride=stride, pad=pad, H=H, W=W, Ho=Ho, Wo=Wo,
                                E=exp, F=F, act=act, se=SE, use_connect=use_connect)

    out = pl.pallas_call(
        kernel,
        out_shape=jax.ShapeDtypeStruct((B, out_ch, Ho * Wo), jnp.float32),
        grid=(B,),
        in_specs=in_specs,
        out_specs=pl.BlockSpec((None, out_ch, Ho * Wo), lambda b: (b, 0, 0)),
        scratch_shapes=[pltpu.VMEM((exp, F), jnp.float32)],
        compiler_params=pltpu.CompilerParams(
            dimension_semantics=("parallel",),
            vmem_limit_bytes=_vmem_limit_bytes()),
    )(*args)
    return out.reshape(B, out_ch, Ho, Wo)                  # NCHW (metadata-only reshape)


# --------------------------- pure-JAX reference check --------------------------
def bneck_reference(x_nchw, p, *, kernel_size, stride, padding, HS, RE, SE,
                    in_ch, out_ch, exp):
    use_connect = (stride == 1) and (in_ch == out_ch)
    act = "RE" if RE else ("HS" if HS else "none")
    x = jnp.transpose(x_nchw, (0, 2, 3, 1)).astype(jnp.float32)
    B, H, W, _ = x.shape

    scale1, shift1 = fold_bn(p["bn1_g"], p["bn1_b"], p["bn1_m"], p["bn1_v"])
    scale2, shift2 = fold_bn(p["bn2_g"], p["bn2_b"], p["bn2_m"], p["bn2_v"], p["b_dw"])
    scale3, shift3 = fold_bn(p["bn3_g"], p["bn3_b"], p["bn3_m"], p["bn3_v"], p["b_proj"])

    y = jnp.einsum("bhwc,ce->bhwe", x, p["w_exp"]) * scale1 + shift1
    y = _act(y, act)

    yp = jnp.pad(y, ((0, 0), (padding, padding), (padding, padding), (0, 0)))
    Ho = (H + 2 * padding - kernel_size) // stride + 1
    Wo = (W + 2 * padding - kernel_size) // stride + 1
    out = jnp.zeros((B, Ho, Wo, exp), jnp.float32)
    for kh in range(kernel_size):
        for kw in range(kernel_size):
            tap = yp[:, kh:kh + (Ho - 1) * stride + 1:stride,
                        kw:kw + (Wo - 1) * stride + 1:stride, :]
            out = out + tap * p["w_dw"][kh, kw, :]
    out = out * scale2 + shift2

    if SE:
        pooled = jnp.mean(out, axis=(1, 2))
        h = jnp.maximum(pooled @ p["w_se1"] + p["b_se1"], 0.0)
        s = h @ p["w_se2"] + p["b_se2"]
        s = jnp.clip(0.2 * s + 0.5, 0.0, 1.0)
        out = out * s[:, None, None, :]

    z = jnp.einsum("bhwe,eo->bhwo", out, p["w_proj"]) * scale3 + shift3
    z = _act(z, act)
    if use_connect:
        z = z + x
    return jnp.transpose(z, (0, 3, 1, 2))


if __name__ == "__main__":
    key = jax.random.PRNGKey(0)
    kp, kx = jax.random.split(key)

    # bneck(in_channels=8, out_channels=8, kernal_size=3, stride=1,
    #       HS=True, RE=False, SE=True, exp_size=16, padding=1)
    in_ch, out_ch, exp, k, stride, pad = 8, 8, 16, 3, 1, 1
    HS, RE, SE = True, False, True
    cfg = dict(kernel_size=k, stride=stride, padding=pad, HS=HS, RE=RE, SE=SE,
               in_ch=in_ch, out_ch=out_ch, exp=exp)

    params = init_params(kp, in_ch, out_ch, exp, k, SE)
    x = jax.random.normal(kx, (2, in_ch, 16, 16), dtype=jnp.float32)   # NCHW

    out = jax.block_until_ready(bneck_forward(x, params, **cfg))
    ref = bneck_reference(x, params, **cfg)

    assert out.shape == ref.shape == (2, out_ch, 16, 16)
    assert jnp.allclose(out, ref, atol=2e-3, rtol=2e-3), float(jnp.max(jnp.abs(out - ref)))
    print("KERNEL_OK")
</pallas_src>

<mosaic_0001>
module attributes {stable_mosaic.version = 11 : i64} {
  func.func @kernel(%arg0: i32, %arg1: memref<1x8x256xf32, #tpu.memory_space<vmem>>, %arg2: memref<16x8xf32, #tpu.memory_space<vmem>>, %arg3: memref<16x1xf32, #tpu.memory_space<vmem>>, %arg4: memref<16x9xf32, #tpu.memory_space<vmem>>, %arg5: memref<16x1xf32, #tpu.memory_space<vmem>>, %arg6: memref<3x256xf32, #tpu.memory_space<vmem>>, %arg7: memref<4x16xf32, #tpu.memory_space<vmem>>, %arg8: memref<4x1xf32, #tpu.memory_space<vmem>>, %arg9: memref<16x4xf32, #tpu.memory_space<vmem>>, %arg10: memref<16x1xf32, #tpu.memory_space<vmem>>, %arg11: memref<8x16xf32, #tpu.memory_space<vmem>>, %arg12: memref<8x1xf32, #tpu.memory_space<vmem>>, %arg13: memref<1x8x256xf32, #tpu.memory_space<vmem>>, %arg14: memref<16x290xf32, #tpu.memory_space<vmem>>) attributes {dimension_semantics = [#tpu.dimension_semantics<parallel>], iteration_bounds = array<i64: 2>, scalar_prefetch = 0 : i64, scratch_operands = 1 : i64, tpu.core_type = #tpu.core_type<tc>, window_params = [{transform_indices = @transform_0, window_bounds = array<i64: 1, 8, 256>}, {pipeline_mode = #tpu.pipeline_mode<synchronous>, transform_indices = @transform_1, window_bounds = array<i64: 16, 8>}, {pipeline_mode = #tpu.pipeline_mode<synchronous>, transform_indices = @transform_2, window_bounds = array<i64: 16, 1>}, {pipeline_mode = #tpu.pipeline_mode<synchronous>, transform_indices = @transform_3, window_bounds = array<i64: 16, 9>}, {pipeline_mode = #tpu.pipeline_mode<synchronous>, transform_indices = @transform_4, window_bounds = array<i64: 16, 1>}, {pipeline_mode = #tpu.pipeline_mode<synchronous>, transform_indices = @transform_5, window_bounds = array<i64: 3, 256>}, {pipeline_mode = #tpu.pipeline_mode<synchronous>, transform_indices = @transform_6, window_bounds = array<i64: 4, 16>}, {pipeline_mode = #tpu.pipeline_mode<synchronous>, transform_indices = @transform_7, window_bounds = array<i64: 4, 1>}, {pipeline_mode = #tpu.pipeline_mode<synchronous>, transform_indices = @transform_8, window_bounds = array<i64: 16, 4>}, {pipeline_mode = #tpu.pipeline_mode<synchronous>, transform_indices = @transform_9, window_bounds = array<i64: 16, 1>}, {pipeline_mode = #tpu.pipeline_mode<synchronous>, transform_indices = @transform_10, window_bounds = array<i64: 8, 16>}, {pipeline_mode = #tpu.pipeline_mode<synchronous>, transform_indices = @transform_11, window_bounds = array<i64: 8, 1>}, {transform_indices = @transform_12, window_bounds = array<i64: 1, 8, 256>}]} {
    %c0 = arith.constant 0 : index
    %c0_0 = arith.constant 0 : index
    %0 = vector.load %arg2[%c0, %c0_0] : memref<16x8xf32, #tpu.memory_space<vmem>>, vector<16x8xf32>
    %c0_1 = arith.constant 0 : index
    %c0_2 = arith.constant 0 : index
    %c0_3 = arith.constant 0 : index
    %1 = vector.load %arg1[%c0_1, %c0_2, %c0_3] : memref<1x8x256xf32, #tpu.memory_space<vmem>>, vector<1x8x256xf32>
    %2 = vector.shape_cast %1 : vector<1x8x256xf32> to vector<8x256xf32>
    %cst = arith.constant dense<0.000000e+00> : vector<16x256xf32>
    %3 = tpu.matmul %0, %2, %cst {dimension_numbers = #tpu.dot_dimension_numbers<[1], [0], [0], [1], [0, 0, 1, 1], [], []>} : vector<16x8xf32>, vector<8x256xf32>, vector<16x256xf32> -> vector<16x256xf32>
    %c0_4 = arith.constant 0 : index
    %c0_5 = arith.constant 0 : index
    %4 = vector.load %arg3[%c0_4, %c0_5] : memref<16x1xf32, #tpu.memory_space<vmem>>, vector<16x1xf32>
    %5 = vector.broadcast %4 : vector<16x1xf32> to vector<16x256xf32>
    %6 = arith.addf %3, %5 : vector<16x256xf32>
    %cst_6 = arith.constant 3.000000e+00 : f32
    %7 = vector.broadcast %cst_6 : f32 to vector<16x256xf32>
    %8 = arith.addf %6, %7 : vector<16x256xf32>
    %cst_7 = arith.constant 0.000000e+00 : f32
    %cst_8 = arith.constant 6.000000e+00 : f32
    %9 = vector.broadcast %cst_7 : f32 to vector<16x256xf32>
    %10 = arith.maximumf %9, %8 : vector<16x256xf32>
    %11 = vector.broadcast %cst_8 : f32 to vector<16x256xf32>
    %12 = arith.minimumf %11, %10 : vector<16x256xf32>
    %cst_9 = arith.constant 0.166666672 : f32
    %13 = vector.broadcast %cst_9 : f32 to vector<16x256xf32>
    %14 = arith.mulf %12, %13 : vector<16x256xf32>
    %15 = arith.mulf %14, %6 : vector<16x256xf32>
    %cst_10 = arith.constant 0.000000e+00 : f32
    %16 = vector.broadcast %cst_10 : f32 to vector<16x17xf32>
    %c0_11 = arith.constant 0 : index
    %c0_12 = arith.constant 0 : index
    %17 = vector.load %arg14[%c0_11, %c0_12] : memref<16x290xf32, #tpu.memory_space<vmem>>, vector<16x17xf32>
    tpu.vector_store %arg14[%c0_11, %c0_12], %16 {strides = array<i32>} : memref<16x290xf32, #tpu.memory_space<vmem>>, vector<16x17xf32>,
    %c0_13 = arith.constant 0 : index
    %c17 = arith.constant 17 : index
    %18 = vector.load %arg14[%c0_13, %c17] : memref<16x290xf32, #tpu.memory_space<vmem>>, vector<16x256xf32>
    tpu.vector_store %arg14[%c0_13, %c17], %15 {strides = array<i32>} : memref<16x290xf32, #tpu.memory_space<vmem>>, vector<16x256xf32>,
    %cst_14 = arith.constant 0.000000e+00 : f32
    %19 = vector.broadcast %cst_14 : f32 to vector<16x17xf32>
    %c0_15 = arith.constant 0 : index
    %c273 = arith.constant 273 : index
    %20 = vector.load %arg14[%c0_15, %c273] : memref<16x290xf32, #tpu.memory_space<vmem>>, vector<16x17xf32>
    tpu.vector_store %arg14[%c0_15, %c273], %19 {strides = array<i32>} : memref<16x290xf32, #tpu.memory_space<vmem>>, vector<16x17xf32>,
    %c0_16 = arith.constant 0 : index
    %c0_17 = arith.constant 0 : index
    %21 = vector.load %arg14[%c0_16, %c0_17] : memref<16x290xf32, #tpu.memory_space<vmem>>, vector<16x290xf32>
    %c0_18 = arith.constant 0 : index
    %c0_19 = arith.constant 0 : index
    %22 = vector.load %arg4[%c0_18, %c0_19] : memref<16x9xf32, #tpu.memory_space<vmem>>, vector<16x9xf32>
    %c0_20 = arith.constant 0 : index
    %c0_21 = arith.constant 0 : index
    %23 = vector.load %arg6[%c0_20, %c0_21] : memref<3x256xf32, #tpu.memory_space<vmem>>, vector<3x256xf32>
    %24 = vector.extract_strided_slice %21 {offsets = [0, 0], sizes = [16, 256], strides = [1, 1]} : vector<16x290xf32> to vector<16x256xf32>
    %25 = vector.extract_strided_slice %22 {offsets = [0, 0], sizes = [16, 1], strides = [1, 1]} : vector<16x9xf32> to vector<16x1xf32>
    %26 = vector.broadcast %25 : vector<16x1xf32> to vector<16x256xf32>
    %27 = arith.mulf %24, %26 : vector<16x256xf32>
    %28 = vector.extract_strided_slice %21 {offsets = [0, 16], sizes = [16, 256], strides = [1, 1]} : vector<16x290xf32> to vector<16x256xf32>
    %29 = vector.extract_strided_slice %22 {offsets = [0, 3], sizes = [16, 1], strides = [1, 1]} : vector<16x9xf32> to vector<16x1xf32>
    %30 = vector.broadcast %29 : vector<16x1xf32> to vector<16x256xf32>
    %31 = arith.mulf %28, %30 : vector<16x256xf32>
    %32 = arith.addf %27, %31 : vector<16x256xf32>
    %33 = vector.extract_strided_slice %21 {offsets = [0, 32], sizes = [16, 256], strides = [1, 1]} : vector<16x290xf32> to vector<16x256xf32>
    %34 = vector.extract_strided_slice %22 {offsets = [0, 6], sizes = [16, 1], strides = [1, 1]} : vector<16x9xf32> to vector<16x1xf32>
    %35 = vector.broadcast %34 : vector<16x1xf32> to vector<16x256xf32>
    %36 = arith.mulf %33, %35 : vector<16x256xf32>
    %37 = arith.addf %32, %36 : vector<16x256xf32>
    %38 = vector.extract_strided_slice %23 {offsets = [0, 0], sizes = [1, 256], strides = [1, 1]} : vector<3x256xf32> to vector<1x256xf32>
    %39 = vector.broadcast %38 : vector<1x256xf32> to vector<16x256xf32>
    %40 = arith.mulf %37, %39 : vector<16x256xf32>
    %41 = vector.extract_strided_slice %21 {offsets = [0, 1], sizes = [16, 256], strides = [1, 1]} : vector<16x290xf32> to vector<16x256xf32>
    %42 = vector.extract_strided_slice %22 {offsets = [0, 1], sizes = [16, 1], strides = [1, 1]} : vector<16x9xf32> to vector<16x1xf32>
    %43 = vector.broadcast %42 : vector<16x1xf32> to vector<16x256xf32>
    %44 = arith.mulf %41, %43 : vector<16x256xf32>
    %45 = vector.extract_strided_slice %21 {offsets = [0, 17], sizes = [16, 256], strides = [1, 1]} : vector<16x290xf32> to vector<16x256xf32>
    %46 = vector.extract_strided_slice %22 {offsets = [0, 4], sizes = [16, 1], strides = [1, 1]} : vector<16x9xf32> to vector<16x1xf32>
    %47 = vector.broadcast %46 : vector<16x1xf32> to vector<16x256xf32>
    %48 = arith.mulf %45, %47 : vector<16x256xf32>
    %49 = arith.addf %44, %48 : vector<16x256xf32>
    %50 = vector.extract_strided_slice %21 {offsets = [0, 33], sizes = [16, 256], strides = [1, 1]} : vector<16x290xf32> to vector<16x256xf32>
    %51 = vector.extract_strided_slice %22 {offsets = [0, 7], sizes = [16, 1], strides = [1, 1]} : vector<16x9xf32> to vector<16x1xf32>
    %52 = vector.broadcast %51 : vector<16x1xf32> to vector<16x256xf32>
    %53 = arith.mulf %50, %52 : vector<16x256xf32>
    %54 = arith.addf %49, %53 : vector<16x256xf32>
    %55 = arith.addf %40, %54 : vector<16x256xf32>
    %56 = vector.extract_strided_slice %21 {offsets = [0, 2], sizes = [16, 256], strides = [1, 1]} : vector<16x290xf32> to vector<16x256xf32>
    %57 = vector.extract_strided_slice %22 {offsets = [0, 2], sizes = [16, 1], strides = [1, 1]} : vector<16x9xf32> to vector<16x1xf32>
    %58 = vector.broadcast %57 : vector<16x1xf32> to vector<16x256xf32>
    %59 = arith.mulf %56, %58 : vector<16x256xf32>
    %60 = vector.extract_strided_slice %21 {offsets = [0, 18], sizes = [16, 256], strides = [1, 1]} : vector<16x290xf32> to vector<16x256xf32>
    %61 = vector.extract_strided_slice %22 {offsets = [0, 5], sizes = [16, 1], strides = [1, 1]} : vector<16x9xf32> to vector<16x1xf32>
    %62 = vector.broadcast %61 : vector<16x1xf32> to vector<16x256xf32>
    %63 = arith.mulf %60, %62 : vector<16x256xf32>
    %64 = arith.addf %59, %63 : vector<16x256xf32>
    %65 = vector.extract_strided_slice %21 {offsets = [0, 34], sizes = [16, 256], strides = [1, 1]} : vector<16x290xf32> to vector<16x256xf32>
    %66 = vector.extract_strided_slice %22 {offsets = [0, 8], sizes = [16, 1], strides = [1, 1]} : vector<16x9xf32> to vector<16x1xf32>
    %67 = vector.broadcast %66 : vector<16x1xf32> to vector<16x256xf32>
    %68 = arith.mulf %65, %67 : vector<16x256xf32>
    %69 = arith.addf %64, %68 : vector<16x256xf32>
    %70 = vector.extract_strided_slice %23 {offsets = [2, 0], sizes = [1, 256], strides = [1, 1]} : vector<3x256xf32> to vector<1x256xf32>
    %71 = vector.broadcast %70 : vector<1x256xf32> to vector<16x256xf32>
    %72 = arith.mulf %69, %71 : vector<16x256xf32>
    %73 = arith.addf %55, %72 : vector<16x256xf32>
    %c0_22 = arith.constant 0 : index
    %c0_23 = arith.constant 0 : index
    %74 = vector.load %arg5[%c0_22, %c0_23] : memref<16x1xf32, #tpu.memory_space<vmem>>, vector<16x1xf32>
    %75 = vector.broadcast %74 : vector<16x1xf32> to vector<16x256xf32>
    %76 = arith.addf %73, %75 : vector<16x256xf32>
    %cst_24 = arith.constant dense<0.000000e+00> : vector<16xf32>
    %77 = vector.multi_reduction <add>, %76, %cst_24 [1] : vector<16x256xf32> to vector<16xf32>
    %78 = vector.shape_cast %77 : vector<16xf32> to vector<16x1xf32>
    %cst_25 = arith.constant 3.906250e-03 : f32
    %79 = vector.broadcast %cst_25 : f32 to vector<16x1xf32>
    %80 = arith.mulf %78, %79 : vector<16x1xf32>
    %c0_26 = arith.constant 0 : index
    %c0_27 = arith.constant 0 : index
    %81 = vector.load %arg7[%c0_26, %c0_27] : memref<4x16xf32, #tpu.memory_space<vmem>>, vector<4x16xf32>
    %cst_28 = arith.constant dense<0.000000e+00> : vector<4x1xf32>
    %82 = tpu.matmul %81, %80, %cst_28 {dimension_numbers = #tpu.dot_dimension_numbers<[1], [0], [0], [1], [0, 0, 1, 1], [], []>} : vector<4x16xf32>, vector<16x1xf32>, vector<4x1xf32> -> vector<4x1xf32>
    %c0_29 = arith.constant 0 : index
    %c0_30 = arith.constant 0 : index
    %83 = vector.load %arg8[%c0_29, %c0_30] : memref<4x1xf32, #tpu.memory_space<vmem>>, vector<4x1xf32>
    %84 = arith.addf %82, %83 : vector<4x1xf32>
    %cst_31 = arith.constant 0.000000e+00 : f32
    %85 = vector.broadcast %cst_31 : f32 to vector<4x1xf32>
    %86 = arith.maximumf %84, %85 : vector<4x1xf32>
    %c0_32 = arith.constant 0 : index
    %c0_33 = arith.constant 0 : index
    %87 = vector.load %arg9[%c0_32, %c0_33] : memref<16x4xf32, #tpu.memory_space<vmem>>, vector<16x4xf32>
    %cst_34 = arith.constant dense<0.000000e+00> : vector<16x1xf32>
    %88 = tpu.matmul %87, %86, %cst_34 {dimension_numbers = #tpu.dot_dimension_numbers<[1], [0], [0], [1], [0, 0, 1, 1], [], []>} : vector<16x4xf32>, vector<4x1xf32>, vector<16x1xf32> -> vector<16x1xf32>
    %c0_35 = arith.constant 0 : index
    %c0_36 = arith.constant 0 : index
    %89 = vector.load %arg10[%c0_35, %c0_36] : memref<16x1xf32, #tpu.memory_space<vmem>>, vector<16x1xf32>
    %90 = arith.addf %88, %89 : vector<16x1xf32>
    %cst_37 = arith.constant 2.000000e-01 : f32
    %91 = vector.broadcast %cst_37 : f32 to vector<16x1xf32>
    %92 = arith.mulf %91, %90 : vector<16x1xf32>
    %cst_38 = arith.constant 5.000000e-01 : f32
    %93 = vector.broadcast %cst_38 : f32 to vector<16x1xf32>
    %94 = arith.addf %92, %93 : vector<16x1xf32>
    %cst_39 = arith.constant 0.000000e+00 : f32
    %cst_40 = arith.constant 1.000000e+00 : f32
    %95 = vector.broadcast %cst_39 : f32 to vector<16x1xf32>
    %96 = arith.maximumf %95, %94 : vector<16x1xf32>
    %97 = vector.broadcast %cst_40 : f32 to vector<16x1xf32>
    %98 = arith.minimumf %97, %96 : vector<16x1xf32>
    %99 = vector.broadcast %98 : vector<16x1xf32> to vector<16x256xf32>
    %100 = arith.mulf %76, %99 : vector<16x256xf32>
    %c0_41 = arith.constant 0 : index
    %c0_42 = arith.constant 0 : index
    %101 = vector.load %arg11[%c0_41, %c0_42] : memref<8x16xf32, #tpu.memory_space<vmem>>, vector<8x16xf32>
    %cst_43 = arith.constant dense<0.000000e+00> : vector<8x256xf32>
    %102 = tpu.matmul %101, %100, %cst_43 {dimension_numbers = #tpu.dot_dimension_numbers<[1], [0], [0], [1], [0, 0, 1, 1], [], []>} : vector<8x16xf32>, vector<16x256xf32>, vector<8x256xf32> -> vector<8x256xf32>
    %c0_44 = arith.constant 0 : index
    %c0_45 = arith.constant 0 : index
    %103 = vector.load %arg12[%c0_44, %c0_45] : memref<8x1xf32, #tpu.memory_space<vmem>>, vector<8x1xf32>
    %104 = vector.broadcast %103 : vector<8x1xf32> to vector<8x256xf32>
    %105 = arith.addf %102, %104 : vector<8x256xf32>
    %cst_46 = arith.constant 3.000000e+00 : f32
    %106 = vector.broadcast %cst_46 : f32 to vector<8x256xf32>
    %107 = arith.addf %105, %106 : vector<8x256xf32>
    %cst_47 = arith.constant 0.000000e+00 : f32
    %cst_48 = arith.constant 6.000000e+00 : f32
    %108 = vector.broadcast %cst_47 : f32 to vector<8x256xf32>
    %109 = arith.maximumf %108, %107 : vector<8x256xf32>
    %110 = vector.broadcast %cst_48 : f32 to vector<8x256xf32>
    %111 = arith.minimumf %110, %109 : vector<8x256xf32>
    %cst_49 = arith.constant 0.166666672 : f32
    %112 = vector.broadcast %cst_49 : f32 to vector<8x256xf32>
    %113 = arith.mulf %111, %112 : vector<8x256xf32>
    %114 = arith.mulf %113, %105 : vector<8x256xf32>
    %c0_50 = arith.constant 0 : index
    %c0_51 = arith.constant 0 : index
    %c0_52 = arith.constant 0 : index
    %115 = vector.load %arg1[%c0_50, %c0_51, %c0_52] : memref<1x8x256xf32, #tpu.memory_space<vmem>>, vector<1x8x256xf32>
    %116 = vector.shape_cast %115 : vector<1x8x256xf32> to vector<8x256xf32>
    %117 = arith.addf %114, %116 : vector<8x256xf32>
    %c0_53 = arith.constant 0 : index
    %c0_54 = arith.constant 0 : index
    %c0_55 = arith.constant 0 : index
    %118 = vector.load %arg13[%c0_53, %c0_54, %c0_55] : memref<1x8x256xf32, #tpu.memory_space<vmem>>, vector<1x8x256xf32>
    %119 = vector.shape_cast %118 : vector<1x8x256xf32> to vector<8x256xf32>
    %120 = vector.shape_cast %117 : vector<8x256xf32> to vector<1x8x256xf32>
    tpu.vector_store %arg13[%c0_53, %c0_54, %c0_55], %120 {strides = array<i32>} : memref<1x8x256xf32, #tpu.memory_space<vmem>>, vector<1x8x256xf32>,
    return
  }
  func.func @transform_0(%arg0: i32) -> (i32, i32, i32) {
    %c0_i32 = arith.constant 0 : i32
    %c0_i32_0 = arith.constant 0 : i32
    %c0_i32_1 = arith.constant 0 : i32
    return %arg0, %c0_i32, %c0_i32_0 : i32, i32, i32
  }
  func.func @transform_1(%arg0: i32) -> (i32, i32) {
    %c0_i32 = arith.constant 0 : i32
    %c0_i32_0 = arith.constant 0 : i32
    %c0_i32_1 = arith.constant 0 : i32
    return %c0_i32, %c0_i32_0 : i32, i32
  }
  func.func @transform_2(%arg0: i32) -> (i32, i32) {
    %c0_i32 = arith.constant 0 : i32
    %c0_i32_0 = arith.constant 0 : i32
    %c0_i32_1 = arith.constant 0 : i32
    return %c0_i32, %c0_i32_0 : i32, i32
  }
  func.func @transform_3(%arg0: i32) -> (i32, i32) {
    %c0_i32 = arith.constant 0 : i32
    %c0_i32_0 = arith.constant 0 : i32
    %c0_i32_1 = arith.constant 0 : i32
    return %c0_i32, %c0_i32_0 : i32, i32
  }
  func.func @transform_4(%arg0: i32) -> (i32, i32) {
    %c0_i32 = arith.constant 0 : i32
    %c0_i32_0 = arith.constant 0 : i32
    %c0_i32_1 = arith.constant 0 : i32
    return %c0_i32, %c0_i32_0 : i32, i32
  }
  func.func @transform_5(%arg0: i32) -> (i32, i32) {
    %c0_i32 = arith.constant 0 : i32
    %c0_i32_0 = arith.constant 0 : i32
    %c0_i32_1 = arith.constant 0 : i32
    return %c0_i32, %c0_i32_0 : i32, i32
  }
  func.func @transform_6(%arg0: i32) -> (i32, i32) {
    %c0_i32 = arith.constant 0 : i32
    %c0_i32_0 = arith.constant 0 : i32
    %c0_i32_1 = arith.constant 0 : i32
    return %c0_i32, %c0_i32_0 : i32, i32
  }
  func.func @transform_7(%arg0: i32) -> (i32, i32) {
    %c0_i32 = arith.constant 0 : i32
    %c0_i32_0 = arith.constant 0 : i32
    %c0_i32_1 = arith.constant 0 : i32
    return %c0_i32, %c0_i32_0 : i32, i32
  }
  func.func @transform_8(%arg0: i32) -> (i32, i32) {
    %c0_i32 = arith.constant 0 : i32
    %c0_i32_0 = arith.constant 0 : i32
    %c0_i32_1 = arith.constant 0 : i32
    return %c0_i32, %c0_i32_0 : i32, i32
  }
  func.func @transform_9(%arg0: i32) -> (i32, i32) {
    %c0_i32 = arith.constant 0 : i32
    %c0_i32_0 = arith.constant 0 : i32
    %c0_i32_1 = arith.constant 0 : i32
    return %c0_i32, %c0_i32_0 : i32, i32
  }
  func.func @transform_10(%arg0: i32) -> (i32, i32) {
    %c0_i32 = arith.constant 0 : i32
    %c0_i32_0 = arith.constant 0 : i32
    %c0_i32_1 = arith.constant 0 : i32
    return %c0_i32, %c0_i32_0 : i32, i32
  }
  func.func @transform_11(%arg0: i32) -> (i32, i32) {
    %c0_i32 = arith.constant 0 : i32
    %c0_i32_0 = arith.constant 0 : i32
    %c0_i32_1 = arith.constant 0 : i32
    return %c0_i32, %c0_i32_0 : i32, i32
  }
  func.func @transform_12(%arg0: i32) -> (i32, i32, i32) {
    %c0_i32 = arith.constant 0 : i32
    %c0_i32_0 = arith.constant 0 : i32
    %c0_i32_1 = arith.constant 0 : i32
    return %arg0, %c0_i32, %c0_i32_0 : i32, i32, i32
  }
}

</mosaic_0001>

<llo_original>
// kernel: tpu_custom_call.1
$region0: #{tpu_custom_call.1}
  #allocation0 [shape = 'u32[]', space=smem, size = 0x4, offset = 0x4, fixed_abs, tag = 'smem constant byte address 0x4 - core index']
  #allocation1 [shape = 'u32[144,128]{1,0:T(1,128)}', space=vmem, size = 0x12000, scoped, tag = 'internal scratch']
  #allocation2 [shape = 'f32[16,290]{1,0:T(8,128)}', space=vmem, size = 0x6000, scoped, tag = 'scratch operand']
  %s0 = inlined_call_operand.vmem [shape: f32[2,8,256], index: 0, kind: input, shape index: {}]
  %s1 = inlined_call_operand.vmem [shape: f32[16,8], index: 1, kind: input, shape index: {}]
  %s2 = inlined_call_operand.vmem [shape: f32[16,1], index: 2, kind: input, shape index: {}]
  %s3 = inlined_call_operand.vmem [shape: f32[16,9], index: 3, kind: input, shape index: {}]
  %s4 = inlined_call_operand.vmem [shape: f32[16,1], index: 4, kind: input, shape index: {}]
  %s5 = inlined_call_operand.vmem [shape: f32[3,256], index: 5, kind: input, shape index: {}]
  %s6 = inlined_call_operand.vmem [shape: f32[4,16], index: 6, kind: input, shape index: {}]
  %s7 = inlined_call_operand.vmem [shape: f32[4,1], index: 7, kind: input, shape index: {}]
  %s8 = inlined_call_operand.vmem [shape: f32[16,4], index: 8, kind: input, shape index: {}]
  %s9 = inlined_call_operand.vmem [shape: f32[16,1], index: 9, kind: input, shape index: {}]
  %s10 = inlined_call_operand.vmem [shape: f32[8,16], index: 10, kind: input, shape index: {}]
  %s11 = inlined_call_operand.vmem [shape: f32[8,1], index: 11, kind: input, shape index: {}]
  %s12 = inlined_call_operand.hbm [shape: f32[2,8,256], index: 12, kind: output, shape index: {}]
  %s13 = sld [smem:[#allocation0]]
  $region81: #{tpu_custom_call.1} parent=0
    _
  %s15 = ssub.s32 1, %s13
  %s16 = scalar_select 0, %s15, %s13
  $region1: #{tpu_custom_call.1} parent=0
    #allocation3 [shape = 'u8[16384]{0}', space=vmem, size = 0x4000, scoped, tag = 'output window, operand 0']
    #allocation4 [shape = 's32[2]{0}', space=sflag, size = 0x8, scoped, tag = 'scoped memory for tpu_custom_call.1']
    %17 = vsyncpa [#allocation4], 0
    %s18 = scalar_lea.sflag [#allocation4], 1
    %19 = vsyncpa %s18, 0
    loop: start=0, step=1, limit=4
    $region2: #{tpu_custom_call.1} parent=1 // loop_pre_header
      _
    $region3: #{tpu_custom_call.1} parent=1 // loop_header
      %s21 = sphi 0, %s25
      %p22 = scmp.ge.s32.totalorder %s21, 4
      %s31 = sphi 0, %s33
      %s34 = sphi 0, %s31
      %s35 = sphi 0, %s34
      %s51 = sphi 0, %s35
      %s55 = sphi 0, %s55
      %s57 = sphi 0, %s55
      %s58 = sphi 0, %s57
      %s72 = sphi 0, %s58
      %s76 = sphi 0, %s76
      %s78 = sphi 0, %s76
      %s79 = sphi 0, %s78
      %s93 = sphi 0, %s79
      %s97 = sphi 0, %s97
      %s99 = sphi 0, %s97
      %s100 = sphi 0, %s99
      %s114 = sphi 0, %s100
      %s118 = sphi 0, %s118
      %s120 = sphi 0, %s118
      %s121 = sphi 0, %s120
      %s135 = sphi 0, %s121
      %s139 = sphi 0, %s139
      %s141 = sphi 0, %s139
      %s142 = sphi 0, %s141
      %s156 = sphi 0, %s142
      %s160 = sphi 0, %s160
      %s162 = sphi 0, %s160
      %s163 = sphi 0, %s162
      %s177 = sphi 0, %s163
      %s181 = sphi 0, %s181
      %s183 = sphi 0, %s181
      %s184 = sphi 0, %s183
      %s198 = sphi 0, %s184
      %s202 = sphi 0, %s202
      %s204 = sphi 0, %s202
      %s205 = sphi 0, %s204
      %s219 = sphi 0, %s205
      %s223 = sphi 0, %s223
      %s225 = sphi 0, %s223
      %s226 = sphi 0, %s225
      %s240 = sphi 0, %s226
      %s244 = sphi 0, %s244
      %s246 = sphi 0, %s244
      %s247 = sphi 0, %s246
      %s261 = sphi 0, %s247
      %s265 = sphi 0, %s265
      %s267 = sphi 0, %s265
      %s268 = sphi 0, %s267
      %s282 = sphi 0, %s268
      %s288 = sphi 0, %s290
      %s291 = sphi 0, %s288
      %s292 = sphi 0, %s291
      %s308 = sphi 0, %s292
    $region4: #{tpu_custom_call.1} parent=1 // loop_header_branch
      %24 = sbr.rel (%p22) target = $region8
    $region5: #{tpu_custom_call.1} parent=1 // loop_body
      %s26 = ssub.s32 %s21, 1
      %s27 = ssub.s32 %s21, 2
      %s28 = sadd.s32 %s21, 1
      %s29 = ssub.s32 %s21, %s28
      %p30 = scmp.eq.s32.totalorder %s29, 0
      %s32 = sadd.s32 %s31, 1
      %s33 = scalar_select %p30, %s31, %s32
      %p36 = pneg %p30
      %p37 = scmp.eq.s32.totalorder %s21, 1
      %p38 = por %p36, %p37
      %p39 = scmp.ne.s32.totalorder %s31, %s34
      %p40 = scmp.eq.s32.totalorder %s21, 0
      %p41 = por %p39, %p40
      %p42 = scmp.ne.s32.totalorder %s31, %s34
      %p43 = scmp.eq.s32.totalorder %s26, 1
      %p44 = por %p42, %p43
      %p45 = scmp.ne.s32.totalorder %s34, %s35
      %p46 = scmp.eq.s32.totalorder %s26, 0
      %p47 = por %p45, %p46
      %p48 = scmp.ne.s32.totalorder %s34, %s35
      %p49 = scmp.eq.s32.totalorder %s27, 1
      %p50 = por %p48, %p49
      %p52 = scmp.ne.s32.totalorder %s35, %s51
      %p53 = scmp.eq.s32.totalorder %s27, 0
      %p54 = por %p52, %p53
      %s56 = sadd.s32 %s55, 1
      %p59 = scmp.eq.s32.totalorder %s21, 1
      %p60 = scmp.ne.s32.totalorder %s55, %s57
      %p61 = scmp.eq.s32.totalorder %s21, 0
      %p62 = por %p60, %p61
      %p63 = scmp.ne.s32.totalorder %s55, %s57
      %p64 = scmp.eq.s32.totalorder %s26, 1
      %p65 = por %p63, %p64
      %p66 = scmp.ne.s32.totalorder %s57, %s58
      %p67 = scmp.eq.s32.totalorder %s26, 0
      %p68 = por %p66, %p67
      %p69 = scmp.ne.s32.totalorder %s57, %s58
      %p70 = scmp.eq.s32.totalorder %s27, 1
      %p71 = por %p69, %p70
      %p73 = scmp.ne.s32.totalorder %s58, %s72
      %p74 = scmp.eq.s32.totalorder %s27, 0
      %p75 = por %p73, %p74
      %s77 = sadd.s32 %s76, 1
      %p80 = scmp.eq.s32.totalorder %s21, 1
      %p81 = scmp.ne.s32.totalorder %s76, %s78
      %p82 = scmp.eq.s32.totalorder %s21, 0
      %p83 = por %p81, %p82
      %p84 = scmp.ne.s32.totalorder %s76, %s78
      %p85 = scmp.eq.s32.totalorder %s26, 1
      %p86 = por %p84, %p85
      %p87 = scmp.ne.s32.totalorder %s78, %s79
      %p88 = scmp.eq.s32.totalorder %s26, 0
      %p89 = por %p87, %p88
      %p90 = scmp.ne.s32.totalorder %s78, %s79
      %p91 = scmp.eq.s32.totalorder %s27, 1
      %p92 = por %p90, %p91
      %p94 = scmp.ne.s32.totalorder %s79, %s93
      %p95 = scmp.eq.s32.totalorder %s27, 0
      %p96 = por %p94, %p95
      %s98 = sadd.s32 %s97, 1
      %p101 = scmp.eq.s32.totalorder %s21, 1
      %p102 = scmp.ne.s32.totalorder %s97, %s99
      %p103 = scmp.eq.s32.totalorder %s21, 0
      %p104 = por %p102, %p103
      %p105 = scmp.ne.s32.totalorder %s97, %s99
      %p106 = scmp.eq.s32.totalorder %s26, 1
      %p107 = por %p105, %p106
      %p108 = scmp.ne.s32.totalorder %s99, %s100
      %p109 = scmp.eq.s32.totalorder %s26, 0
      %p110 = por %p108, %p109
      %p111 = scmp.ne.s32.totalorder %s99, %s100
      %p112 = scmp.eq.s32.totalorder %s27, 1
      %p113 = por %p111, %p112
      %p115 = scmp.ne.s32.totalorder %s100, %s114
      %p116 = scmp.eq.s32.totalorder %s27, 0
      %p117 = por %p115, %p116
      %s119 = sadd.s32 %s118, 1
      %p122 = scmp.eq.s32.totalorder %s21, 1
      %p123 = scmp.ne.s32.totalorder %s118, %s120
      %p124 = scmp.eq.s32.totalorder %s21, 0
      %p125 = por %p123, %p124
      %p126 = scmp.ne.s32.totalorder %s118, %s120
      %p127 = scmp.eq.s32.totalorder %s26, 1
      %p128 = por %p126, %p127
      %p129 = scmp.ne.s32.totalorder %s120, %s121
      %p130 = scmp.eq.s32.totalorder %s26, 0
      %p131 = por %p129, %p130
      %p132 = scmp.ne.s32.totalorder %s120, %s121
      %p133 = scmp.eq.s32.totalorder %s27, 1
      %p134 = por %p132, %p133
      %p136 = scmp.ne.s32.totalorder %s121, %s135
      %p137 = scmp.eq.s32.totalorder %s27, 0
      %p138 = por %p136, %p137
      %s140 = sadd.s32 %s139, 1
      %p143 = scmp.eq.s32.totalorder %s21, 1
      %p144 = scmp.ne.s32.totalorder %s139, %s141
      %p145 = scmp.eq.s32.totalorder %s21, 0
      %p146 = por %p144, %p145
      %p147 = scmp.ne.s32.totalorder %s139, %s141
      %p148 = scmp.eq.s32.totalorder %s26, 1
      %p149 = por %p147, %p148
      %p150 = scmp.ne.s32.totalorder %s141, %s142
      %p151 = scmp.eq.s32.totalorder %s26, 0
      %p152 = por %p150, %p151
      %p153 = scmp.ne.s32.totalorder %s141, %s142
      %p154 = scmp.eq.s32.totalorder %s27, 1
      %p155 = por %p153, %p154
      %p157 = scmp.ne.s32.totalorder %s142, %s156
      %p158 = scmp.eq.s32.totalorder %s27, 0
      %p159 = por %p157, %p158
      %s161 = sadd.s32 %s160, 1
      %p164 = scmp.eq.s32.totalorder %s21, 1
      %p165 = scmp.ne.s32.totalorder %s160, %s162
      %p166 = scmp.eq.s32.totalorder %s21, 0
      %p167 = por %p165, %p166
      %p168 = scmp.ne.s32.totalorder %s160, %s162
      %p169 = scmp.eq.s32.totalorder %s26, 1
      %p170 = por %p168, %p169
      %p171 = scmp.ne.s32.totalorder %s162, %s163
      %p172 = scmp.eq.s32.totalorder %s26, 0
      %p173 = por %p171, %p172
      %p174 = scmp.ne.s32.totalorder %s162, %s163
      %p175 = scmp.eq.s32.totalorder %s27, 1
      %p176 = por %p174, %p175
      %p178 = scmp.ne.s32.totalorder %s163, %s177
      %p179 = scmp.eq.s32.totalorder %s27, 0
      %p180 = por %p178, %p179
      %s182 = sadd.s32 %s181, 1
      %p185 = scmp.eq.s32.totalorder %s21, 1
      %p186 = scmp.ne.s32.totalorder %s181, %s183
      %p187 = scmp.eq.s32.totalorder %s21, 0
      %p188 = por %p186, %p187
      %p189 = scmp.ne.s32.totalorder %s181, %s183
      %p190 = scmp.eq.s32.totalorder %s26, 1
      %p191 = por %p189, %p190
      %p192 = scmp.ne.s32.totalorder %s183, %s184
      %p193 = scmp.eq.s32.totalorder %s26, 0
      %p194 = por %p192, %p193
      %p195 = scmp.ne.s32.totalorder %s183, %s184
      %p196 = scmp.eq.s32.totalorder %s27, 1
      %p197 = por %p195, %p196
      %p199 = scmp.ne.s32.totalorder %s184, %s198
      %p200 = scmp.eq.s32.totalorder %s27, 0
      %p201 = por %p199, %p200
      %s203 = sadd.s32 %s202, 1
      %p206 = scmp.eq.s32.totalorder %s21, 1
      %p207 = scmp.ne.s32.totalorder %s202, %s204
      %p208 = scmp.eq.s32.totalorder %s21, 0
      %p209 = por %p207, %p208
      %p210 = scmp.ne.s32.totalorder %s202, %s204
      %p211 = scmp.eq.s32.totalorder %s26, 1
      %p212 = por %p210, %p211
      %p213 = scmp.ne.s32.totalorder %s204, %s205
      %p214 = scmp.eq.s32.totalorder %s26, 0
      %p215 = por %p213, %p214
      %p216 = scmp.ne.s32.totalorder %s204, %s205
      %p217 = scmp.eq.s32.totalorder %s27, 1
      %p218 = por %p216, %p217
      %p220 = scmp.ne.s32.totalorder %s205, %s219
      %p221 = scmp.eq.s32.totalorder %s27, 0
      %p222 = por %p220, %p221
      %s224 = sadd.s32 %s223, 1
      %p227 = scmp.eq.s32.totalorder %s21, 1
      %p228 = scmp.ne.s32.totalorder %s223, %s225
      %p229 = scmp.eq.s32.totalorder %s21, 0
      %p230 = por %p228, %p229
      %p231 = scmp.ne.s32.totalorder %s223, %s225
      %p232 = scmp.eq.s32.totalorder %s26, 1
      %p233 = por %p231, %p232
      %p234 = scmp.ne.s32.totalorder %s225, %s226
      %p235 = scmp.eq.s32.totalorder %s26, 0
      %p236 = por %p234, %p235
      %p237 = scmp.ne.s32.totalorder %s225, %s226
      %p238 = scmp.eq.s32.totalorder %s27, 1
      %p239 = por %p237, %p238
      %p241 = scmp.ne.s32.totalorder %s226, %s240
      %p242 = scmp.eq.s32.totalorder %s27, 0
      %p243 = por %p241, %p242
      %s245 = sadd.s32 %s244, 1
      %p248 = scmp.eq.s32.totalorder %s21, 1
      %p249 = scmp.ne.s32.totalorder %s244, %s246
      %p250 = scmp.eq.s32.totalorder %s21, 0
      %p251 = por %p249, %p250
      %p252 = scmp.ne.s32.totalorder %s244, %s246
      %p253 = scmp.eq.s32.totalorder %s26, 1
      %p254 = por %p252, %p253
      %p255 = scmp.ne.s32.totalorder %s246, %s247
      %p256 = scmp.eq.s32.totalorder %s26, 0
      %p257 = por %p255, %p256
      %p258 = scmp.ne.s32.totalorder %s246, %s247
      %p259 = scmp.eq.s32.totalorder %s27, 1
      %p260 = por %p258, %p259
      %p262 = scmp.ne.s32.totalorder %s247, %s261
      %p263 = scmp.eq.s32.totalorder %s27, 0
      %p264 = por %p262, %p263
      %s266 = sadd.s32 %s265, 1
      %p269 = scmp.eq.s32.totalorder %s21, 1
      %p270 = scmp.ne.s32.totalorder %s265, %s267
      %p271 = scmp.eq.s32.totalorder %s21, 0
      %p272 = por %p270, %p271
      %p273 = scmp.ne.s32.totalorder %s265, %s267
      %p274 = scmp.eq.s32.totalorder %s26, 1
      %p275 = por %p273, %p274
      %p276 = scmp.ne.s32.totalorder %s267, %s268
      %p277 = scmp.eq.s32.totalorder %s26, 0
      %p278 = por %p276, %p277
      %p279 = scmp.ne.s32.totalorder %s267, %s268
      %p280 = scmp.eq.s32.totalorder %s27, 1
      %p281 = por %p279, %p280
      %p283 = scmp.ne.s32.totalorder %s268, %s282
      %p284 = scmp.eq.s32.totalorder %s27, 0
      %p285 = por %p283, %p284
      %s286 = ssub.s32 %s21, %s28
      %p287 = scmp.eq.s32.totalorder %s286, 0
      %s289 = sadd.s32 %s288, 1
      %s290 = scalar_select %p287, %s288, %s289
      %p293 = pneg %p287
      %p294 = scmp.eq.s32.totalorder %s21, 1
      %p295 = por %p293, %p294
      %p296 = scmp.ne.s32.totalorder %s288, %s291
      %p297 = scmp.eq.s32.totalorder %s21, 0
      %p298 = por %p296, %p297
      %p299 = scmp.ne.s32.totalorder %s288, %s291
      %p300 = scmp.eq.s32.totalorder %s26, 1
      %p301 = por %p299, %p300
      %p302 = scmp.ne.s32.totalorder %s291, %s292
      %p303 = scmp.eq.s32.totalorder %s26, 0
      %p304 = por %p302, %p303
      %p305 = scmp.ne.s32.totalorder %s291, %s292
      %p306 = scmp.eq.s32.totalorder %s27, 1
      %p307 = por %p305, %p306
      %p309 = scmp.ne.s32.totalorder %s292, %s308
      %p310 = scmp.eq.s32.totalorder %s27, 0
      %p311 = por %p309, %p310
      %p312 = scmp.le.s32.totalorder 1, %s21
      %p313 = scmp.lt.s32.totalorder %s21, 3
      %p314 = pnand %p312, %p313
      %p315 = pneg %p314
      // Predicated region
      $region9: #{tpu_custom_call.1} parent=5 // pred_check
        _
      $region10: #{tpu_custom_call.1} parent=5 // pred_check_branch
        %317 = sbr.rel (%p314) target = $region12
      $region11: #{tpu_custom_call.1} parent=5 // pred_region
        %s318 = ssub.s32 %s21, 1
        // Predicated region
        $region13: #{tpu_custom_call.1} parent=11 // pred_check
          %p319 = pneg %p68
        $region14: #{tpu_custom_call.1} parent=11 // pred_check_branch
          %321 = sbr.rel (%p319) target = $region16
        $region15: #{tpu_custom_call.1} parent=11 // pred_region
          _
        $region16: #{tpu_custom_call.1} parent=11 // pred_fallthru
          _
        // Predicated region
        $region17: #{tpu_custom_call.1} parent=11 // pred_check
          %p322 = pneg %p89
        $region18: #{tpu_custom_call.1} parent=11 // pred_check_branch
          %324 = sbr.rel (%p322) target = $region20
        $region19: #{tpu_custom_call.1} parent=11 // pred_region
          _
        $region20: #{tpu_custom_call.1} parent=11 // pred_fallthru
          _
        // Predicated region
        $region21: #{tpu_custom_call.1} parent=11 // pred_check
          %p325 = pneg %p110
        $region22: #{tpu_custom_call.1} parent=11 // pred_check_branch
          %327 = sbr.rel (%p325) target = $region24
        $region23: #{tpu_custom_call.1} parent=11 // pred_region
          _
        $region24: #{tpu_custom_call.1} parent=11 // pred_fallthru
          _
        // Predicated region
        $region25: #{tpu_custom_call.1} parent=11 // pred_check
          %p328 = pneg %p131
        $region26: #{tpu_custom_call.1} parent=11 // pred_check_branch
          %330 = sbr.rel (%p328) target = $region28
        $region27: #{tpu_custom_call.1} parent=11 // pred_region
          _
        $region28: #{tpu_custom_call.1} parent=11 // pred_fallthru
          _
        // Predicated region
        $region29: #{tpu_custom_call.1} parent=11 // pred_check
          %p331 = pneg %p152
        $region30: #{tpu_custom_call.1} parent=11 // pred_check_branch
          %333 = sbr.rel (%p331) target = $region32
        $region31: #{tpu_custom_call.1} parent=11 // pred_region
          _
        $region32: #{tpu_custom_call.1} parent=11 // pred_fallthru
          _
        // Predicated region
        $region33: #{tpu_custom_call.1} parent=11 // pred_check
          %p334 = pneg %p173
        $region34: #{tpu_custom_call.1} parent=11 // pred_check_branch
          %336 = sbr.rel (%p334) target = $region36
        $region35: #{tpu_custom_call.1} parent=11 // pred_region
          _
        $region36: #{tpu_custom_call.1} parent=11 // pred_fallthru
          _
        // Predicated region
        $region37: #{tpu_custom_call.1} parent=11 // pred_check
          %p337 = pneg %p194
        $region38: #{tpu_custom_call.1} parent=11 // pred_check_branch
          %339 = sbr.rel (%p337) target = $region40
        $region39: #{tpu_custom_call.1} parent=11 // pred_region
          _
        $region40: #{tpu_custom_call.1} parent=11 // pred_fallthru
          _
        // Predicated region
        $region41: #{tpu_custom_call.1} parent=11 // pred_check
          %p340 = pneg %p215
        $region42: #{tpu_custom_call.1} parent=11 // pred_check_branch
          %342 = sbr.rel (%p340) target = $region44
        $region43: #{tpu_custom_call.1} parent=11 // pred_region
          _
        $region44: #{tpu_custom_call.1} parent=11 // pred_fallthru
          _
        // Predicated region
        $region45: #{tpu_custom_call.1} parent=11 // pred_check
          %p343 = pneg %p236
        $region46: #{tpu_custom_call.1} parent=11 // pred_check_branch
          %345 = sbr.rel (%p343) target = $region48
        $region47: #{tpu_custom_call.1} parent=11 // pred_region
          _
        $region48: #{tpu_custom_call.1} parent=11 // pred_fallthru
          _
        // Predicated region
        $region49: #{tpu_custom_call.1} parent=11 // pred_check
          %p346 = pneg %p257
        $region50: #{tpu_custom_call.1} parent=11 // pred_check_branch
          %348 = sbr.rel (%p346) target = $region52
        $region51: #{tpu_custom_call.1} parent=11 // pred_region
          _
        $region52: #{tpu_custom_call.1} parent=11 // pred_fallthru
          _
        // Predicated region
        $region53: #{tpu_custom_call.1} parent=11 // pred_check
          %p349 = pneg %p278
        $region54: #{tpu_custom_call.1} parent=11 // pred_check_branch
          %351 = sbr.rel (%p349) target = $region56
        $region55: #{tpu_custom_call.1} parent=11 // pred_region
          _
        $region56: #{tpu_custom_call.1} parent=11 // pred_fallthru
          _
      $region12: #{tpu_custom_call.1} parent=5 // pred_fallthru
        _
      %p352 = scmp.lt.s32.totalorder %s21, 2
      // Predicated region
      $region57: #{tpu_custom_call.1} parent=5 // pred_check
        %p353 = pneg %p352
      $region58: #{tpu_custom_call.1} parent=5 // pred_check_branch
        %355 = sbr.rel (%p353) target = $region60
      $region59: #{tpu_custom_call.1} parent=5 // pred_region
        // Predicated region
        $region61: #{tpu_custom_call.1} parent=59 // pred_check
          %p356 = pneg %p41
        $region62: #{tpu_custom_call.1} parent=59 // pred_check_branch
          %358 = sbr.rel (%p356) target = $region64
        $region63: #{tpu_custom_call.1} parent=59 // pred_region
          %p359 = scmp.lt.s32.totalorder %s21, 1
          %s360 = scalar_select %p359, %s21, 1
          %s361 = smul.addr %s360, 2
          %s362 = smul.addr %s361, 8
          %s363 = scalar_lea.vmem %s0, %s362
        $region64: #{tpu_custom_call.1} parent=59 // pred_fallthru
          _
      $region60: #{tpu_custom_call.1} parent=5 // pred_fallthru
        _
      %p364 = scmp.le.s32.totalorder 1, %s21
      %p365 = scmp.lt.s32.totalorder %s21, 3
      %p366 = pnand %p364, %p365
      %p367 = pneg %p366
      // Predicated region
      $region65: #{tpu_custom_call.1} parent=5 // pred_check
        _
      $region66: #{tpu_custom_call.1} parent=5 // pred_check_branch
        %369 = sbr.rel (%p366) target = $region68
      $region67: #{tpu_custom_call.1} parent=5 // pred_region
        %s370 = ssub.s32 %s21, 1
        %p371 = scmp.lt.s32.totalorder %s26, 1
        %s372 = scalar_select %p371, %s26, 1
        %s373 = smul.addr %s372, 2
        %s374 = smul.addr %s373, 8
        %s375 = scalar_lea.vmem %s0, %s374
        %p376 = pneg %p47
        %p377 = pneg %p44
        %p378 = pneg %p68
        %p379 = pneg %p65
        %p380 = pneg %p89
        %p381 = pneg %p86
        %p382 = pneg %p110
        %p383 = pneg %p107
        %p384 = pneg %p131
        %p385 = pneg %p128
        %p386 = pneg %p152
        %p387 = pneg %p149
        %p388 = pneg %p173
        %p389 = pneg %p170
        %p390 = pneg %p194
        %p391 = pneg %p191
        %p392 = pneg %p215
        %p393 = pneg %p212
        %p394 = pneg %p236
        %p395 = pneg %p233
        %p396 = pneg %p257
        %p397 = pneg %p254
        %p398 = pneg %p278
        %p399 = pneg %p275
        %p400 = pneg %p304
        %p401 = pneg %p301
        %s402 = sand.u32 %s291, 1
        %s403 = scalar_lea.sflag [#allocation4], %s402
        %s404 = sand.u32 %s291, 1
        %s405 = smul.addr %s404, 16
        %s406 = scalar_lea.vmem [#allocation3], %s405
        %p407 = scmp.lt.s32.totalorder %s26, 1
        %s408 = scalar_select %p407, %s26, 1
        %s409 = smul.addr %s408, 2
        %s410 = smul.addr %s409, 8
        %s411 = scalar_lea.vmem %s0, %s410
        %v412 = vld [vmem:[%s1] sm:$0xff]
        %v413 = vld [vmem:[%s1 + $0x8] sm:$0xff]
        %v414 = vld [vmem:[%s411] sm:$0xff]
        %v415 = vld [vmem:[%s411 + $0x8] sm:$0xff]
        %v416 = vld [vmem:[%s2] sm:$0xff]
        %v417 = vld [vmem:[%s2 + $0x8] sm:$0xff]
        %419 = vset.pattern.permute.xlu0 0
        %420 = vperm.xlu0 %419, %v416
        %v421 = vpop.permute.xlu0 %420
        %424 = vset.pattern.permute.xlu0 0
        %425 = vperm.xlu0 %424, %v417
        %v426 = vpop.permute.xlu0 %425
        %vm428 = vcmask 64512
        %v430 = vsel %vm428, %v412, 0
        %v433 = vsel %vm428, %v413, 0
        %435 = vmatprep.subr.mxu0 %v415
        %436 = vmatpush1.msra.mxu0 %v414
        %437 = vmatprep.subr.mxu0 0.0
        %438 = vmatpush1.msra.mxu0 0.0
        %439 = vmatprep.subr.mxu0 0.0
        %440 = vmatpush1.msra.mxu0 0.0
        %441 = vmatprep.subr.mxu0 0.0
        %442 = vmatpush1.msra.mxu0 0.0
        %443 = vmatprep.subr.mxu0 0.0
        %444 = vmatpush1.msra.mxu0 0.0
        %445 = vmatprep.subr.mxu0 0.0
        %446 = vmatpush1.msra.mxu0 0.0
        %447 = vmatprep.subr.mxu0 0.0
        %448 = vmatpush1.msra.mxu0 0.0
        %449 = vmatprep.subr.mxu0 0.0
        %450 = vmatpush1.msra.mxu0 0.0
        %451 = vmatprep.subr.mxu0 0.0
        %452 = vmatpush1.msra.mxu0 0.0
        %453 = vmatprep.subr.mxu0 0.0
        %454 = vmatpush1.msra.mxu0 0.0
        %455 = vmatprep.subr.mxu0 0.0
        %456 = vmatpush1.msra.mxu0 0.0
        %457 = vmatprep.subr.mxu0 0.0
        %458 = vmatpush1.msra.mxu0 0.0
        %459 = vmatprep.subr.mxu0 0.0
        %460 = vmatpush1.msra.mxu0 0.0
        %461 = vmatprep.subr.mxu0 0.0
        %462 = vmatpush1.msra.mxu0 0.0
        %463 = vmatprep.subr.mxu0 0.0
        %464 = vmatpush1.msra.mxu0 0.0
        %465 = vmatprep.subr.mxu0 0.0
        %466 = vmatpush1.msra.mxu0 0.0
        %467 = vmatprep.subr.mxu0 0.0
        %468 = vmatpush1.msra.mxu0 0.0
        %469 = vmatprep.subr.mxu0 0.0
        %470 = vmatpush1.msra.mxu0 0.0
        %471 = vmatprep.subr.mxu0 0.0
        %472 = vmatpush1.msra.mxu0 0.0
        %473 = vmatprep.subr.mxu0 0.0
        %474 = vmatpush1.msra.mxu0 0.0
        %475 = vmatprep.subr.mxu0 0.0
        %476 = vmatpush1.msra.mxu0 0.0
        %477 = vmatprep.subr.mxu0 0.0
        %478 = vmatpush1.msra.mxu0 0.0
        %479 = vmatprep.subr.mxu0 0.0
        %480 = vmatpush1.msra.mxu0 0.0
        %481 = vmatprep.subr.mxu0 0.0
        %482 = vmatpush1.msra.mxu0 0.0
        %483 = vmatprep.subr.mxu0 0.0
        %484 = vmatpush1.msra.mxu0 0.0
        %485 = vmatprep.subr.mxu0 0.0
        %486 = vmatpush1.msra.mxu0 0.0
        %487 = vmatprep.subr.mxu0 0.0
        %488 = vmatpush1.msra.mxu0 0.0
        %489 = vmatprep.subr.mxu0 0.0
        %490 = vmatpush1.msra.mxu0 0.0
        %491 = vmatprep.subr.mxu0 0.0
        %492 = vmatpush1.msra.mxu0 0.0
        %493 = vmatprep.subr.mxu0 0.0
        %494 = vmatpush1.msra.mxu0 0.0
        %495 = vmatprep.subr.mxu0 0.0
        %496 = vmatpush1.msra.mxu0 0.0
        %497 = vmatprep.subr.mxu0 0.0
        %498 = vmatpush1.msra.mxu0 0.0
        %499 = vmatprep.mubr.f32.mxu0 0.0
        %500 = vmatmul.mubr.f32.gmra.mrb[0].mxu0 %v430
        %v501 = vpop.f32.mrb[0].mxu0
        %v502 = vadd.f32 %v421, %v501
        %v503 = vpop.f32.mrb[0].mxu0
        %v504 = vadd.f32 %v421, %v503
        %505 = vmatprep.mubr.f32.mxu0 0.0
        %506 = vmatmul.mubr.f32.gmra.mrb[0].mxu0 %v433
        %v507 = vpop.f32.mrb[0].mxu0
        %v508 = vadd.f32 %v426, %v507
        %v509 = vpop.f32.mrb[0].mxu0
        %v510 = vadd.f32 %v426, %v509
        %511 = vdwg.mxu0
        %v512 = vadd.f32 %v502, 3.0
        %v513 = vadd.f32 %v504, 3.0
        %v514 = vadd.f32 %v508, 3.0
        %v515 = vadd.f32 %v510, 3.0
        %v516 = vmax.f32 %v512, 0.0
        %v517 = vmax.f32 %v513, 0.0
        %v518 = vmax.f32 %v514, 0.0
        %v519 = vmax.f32 %v515, 0.0
        %v520 = vmin.f32 %v516, 6.0
        %v521 = vmin.f32 %v517, 6.0
        %v522 = vmin.f32 %v518, 6.0
        %v523 = vmin.f32 %v519, 6.0
        %v524 = vmul.f32 %v520, 0.16666667
        %v525 = vmul.f32 %v521, 0.16666667
        %v526 = vmul.f32 %v522, 0.16666667
        %v527 = vmul.f32 %v523, 0.16666667
        %v528 = vmul.f32 %v524, %v502
        %v529 = vmul.f32 %v525, %v504
        %v530 = vmul.f32 %v526, %v508
        %v531 = vmul.f32 %v527, %v510
        %vm532 = vcmask 138240
        %533 = vst.msk [vmem:[#allocation2] sm:$0xff] %vm532, 0.0
        %534 = vst.msk [vmem:[#allocation2 + $0x18] sm:$0xff] %vm532, 0.0
        %539 = vrot.lane.b32.xlu0 %v528, 17
        %v540 = vpop.permute.xlu0 %539
        %541 = vrot.lane.b32.xlu0 %v529, 17
        %v542 = vpop.permute.xlu0 %541
        %543 = vrot.lane.b32.xlu0 %v530, 17
        %v544 = vpop.permute.xlu0 %543
        %545 = vrot.lane.b32.xlu0 %v531, 17
        %v546 = vpop.permute.xlu0 %545
        %v547 = vsel %vm532, %v540, %v542
        %v548 = vsel %vm532, %v544, %v546
        %vm555 = vcmask 1047688
        %556 = vst.msk [vmem:[#allocation2] sm:$0xff] %vm555, %v540
        %557 = vst [vmem:[#allocation2 + $0x8] sm:$0xff] %v547
        %558 = vst.msk [vmem:[#allocation2 + $0x10] sm:$0xff] %vm532, %v542
        %559 = vst.msk [vmem:[#allocation2 + $0x18] sm:$0xff] %vm555, %v544
        %560 = vst [vmem:[#allocation2 + $0x20] sm:$0xff] %v548
        %561 = vst.msk [vmem:[#allocation2 + $0x28] sm:$0xff] %vm532, %v546
        %vm562 = vcmask 277640
        %563 = vst.msk [vmem:[#allocation2 + $0x10] sm:$0xff] %vm562, 0.0
        %564 = vst.msk [vmem:[#allocation2 + $0x28] sm:$0xff] %vm562, 0.0
        %v565 = vld [vmem:[#allocation2] sm:$0xff]
        %v566 = vld [vmem:[#allocation2 + $0x8] sm:$0xff]
        %v567 = vld [vmem:[#allocation2 + $0x10] sm:$0xff]
        %v568 = vld [vmem:[#allocation2 + $0x18] sm:$0xff]
        %v569 = vld [vmem:[#allocation2 + $0x20] sm:$0xff]
        %v570 = vld [vmem:[#allocation2 + $0x28] sm:$0xff]
        %v571 = vld [vmem:[%s3] sm:$0xff]
        %v572 = vld [vmem:[%s3 + $0x8] sm:$0xff]
        %v573 = vld [vmem:[%s5] sm:$0x77]
        %575 = vset.pattern.permute.xlu0 0
        %576 = vperm.xlu0 %575, %v571
        %v577 = vpop.permute.xlu0 %576
        %580 = vset.pattern.permute.xlu0 0
        %581 = vperm.xlu0 %580, %v572
        %v582 = vpop.permute.xlu0 %581
        %v584 = vmul.f32 %v565, %v577
        %v585 = vmul.f32 %v566, %v577
        %v586 = vmul.f32 %v568, %v582
        %v587 = vmul.f32 %v569, %v582
        %588 = vset.pattern.permute.xlu0 3
        %589 = vperm.xlu0 %588, %v571
        %v590 = vpop.permute.xlu0 %589
        %592 = vset.pattern.permute.xlu0 3
        %593 = vperm.xlu0 %592, %v572
        %v594 = vpop.permute.xlu0 %593
        %v596 = vmul.f32 %v565, %v590
        %v597 = vmul.f32 %v566, %v590
        %v598 = vmul.f32 %v567, %v590
        %v599 = vmul.f32 %v568, %v594
        %v600 = vmul.f32 %v569, %v594
        %v601 = vmul.f32 %v570, %v594
        %608 = vrot.lane.b32.xlu0 %v596, 112
        %v609 = vpop.permute.xlu0 %608
        %610 = vrot.lane.b32.xlu0 %v597, 112
        %v611 = vpop.permute.xlu0 %610
        %612 = vrot.lane.b32.xlu0 %v598, 112
        %v613 = vpop.permute.xlu0 %612
        %614 = vrot.lane.b32.xlu0 %v599, 112
        %v615 = vpop.permute.xlu0 %614
        %616 = vrot.lane.b32.xlu0 %v600, 112
        %v617 = vpop.permute.xlu0 %616
        %618 = vrot.lane.b32.xlu0 %v601, 112
        %v619 = vpop.permute.xlu0 %618
        %vm620 = vcmask 916480
        %v621 = vsel %vm620, %v609, %v611
        %v622 = vsel %vm620, %v611, %v613
        %v623 = vsel %vm620, %v615, %v617
        %v624 = vsel %vm620, %v617, %v619
        %v629 = vadd.f32 %v584, %v621
        %v630 = vadd.f32 %v585, %v622
        %v631 = vadd.f32 %v586, %v623
        %v632 = vadd.f32 %v587, %v624
        %633 = vset.pattern.permute.xlu0 6
        %634 = vperm.xlu0 %633, %v571
        %v635 = vpop.permute.xlu0 %634
        %637 = vset.pattern.permute.xlu0 6
        %638 = vperm.xlu0 %637, %v572
        %v639 = vpop.permute.xlu0 %638
        %v641 = vmul.f32 %v565, %v635
        %v642 = vmul.f32 %v566, %v635
        %v643 = vmul.f32 %v567, %v635
        %v644 = vmul.f32 %v568, %v639
        %v645 = vmul.f32 %v569, %v639
        %v646 = vmul.f32 %v570, %v639
        %653 = vrot.lane.b32.xlu0 %v641, 96
        %v654 = vpop.permute.xlu0 %653
        %655 = vrot.lane.b32.xlu0 %v642, 96
        %v656 = vpop.permute.xlu0 %655
        %657 = vrot.lane.b32.xlu0 %v643, 96
        %v658 = vpop.permute.xlu0 %657
        %659 = vrot.lane.b32.xlu0 %v644, 96
        %v660 = vpop.permute.xlu0 %659
        %661 = vrot.lane.b32.xlu0 %v645, 96
        %v662 = vpop.permute.xlu0 %661
        %663 = vrot.lane.b32.xlu0 %v646, 96
        %v664 = vpop.permute.xlu0 %663
        %vm665 = vcmask 785408
        %v666 = vsel %vm665, %v654, %v656
        %v667 = vsel %vm665, %v656, %v658
        %v668 = vsel %vm665, %v660, %v662
        %v669 = vsel %vm665, %v662, %v664
        %v674 = vadd.f32 %v629, %v666
        %v675 = vadd.f32 %v630, %v667
        %v676 = vadd.f32 %v631, %v668
        %v677 = vadd.f32 %v632, %v669
        %v679 = vlaneseq
        %v680 = vshrl.u32 %v679, 7
        %v681 = vsub.s32 0, %v680
        %v682 = vrot.slane %v573, %v681
        %v683 = vlaneseq
        %v684 = vshrl.u32 %v683, 7
        %v685 = vsub.s32 4, %v684
        %v686 = vrot.slane %v573, %v685
        %v689 = vlaneseq
        %v690 = vshrl.u32 %v689, 7
        %v691 = vsub.s32 0, %v690
        %v692 = vrot.slane %v682, %v691
        %v693 = vlaneseq
        %v694 = vshrl.u32 %v693, 7
        %v695 = vsub.s32 0, %v694
        %v696 = vrot.slane %v686, %v695
        %v697 = vmul.f32 %v674, %v692
        %v698 = vmul.f32 %v675, %v696
        %v699 = vmul.f32 %v676, %v692
        %v700 = vmul.f32 %v677, %v696
        %701 = vset.pattern.permute.xlu0 1
        %702 = vperm.xlu0 %701, %v571
        %v703 = vpop.permute.xlu0 %702
        %705 = vset.pattern.permute.xlu0 1
        %706 = vperm.xlu0 %705, %v572
        %v707 = vpop.permute.xlu0 %706
        %v709 = vmul.f32 %v565, %v703
        %v710 = vmul.f32 %v566, %v703
        %v711 = vmul.f32 %v567, %v703
        %v712 = vmul.f32 %v568, %v707
        %v713 = vmul.f32 %v569, %v707
        %v714 = vmul.f32 %v570, %v707
        %715 = vset.pattern.permute.xlu0 4
        %716 = vperm.xlu0 %715, %v571
        %v717 = vpop.permute.xlu0 %716
        %719 = vset.pattern.permute.xlu0 4
        %720 = vperm.xlu0 %719, %v572
        %v721 = vpop.permute.xlu0 %720
        %v723 = vmul.f32 %v565, %v717
        %v724 = vmul.f32 %v566, %v717
        %v725 = vmul.f32 %v567, %v717
        %v726 = vmul.f32 %v568, %v721
        %v727 = vmul.f32 %v569, %v721
        %v728 = vmul.f32 %v570, %v721
        %735 = vrot.lane.b32.xlu0 %v723, 112
        %v736 = vpop.permute.xlu0 %735
        %737 = vrot.lane.b32.xlu0 %v724, 112
        %v738 = vpop.permute.xlu0 %737
        %739 = vrot.lane.b32.xlu0 %v725, 112
        %v740 = vpop.permute.xlu0 %739
        %741 = vrot.lane.b32.xlu0 %v726, 112
        %v742 = vpop.permute.xlu0 %741
        %743 = vrot.lane.b32.xlu0 %v727, 112
        %v744 = vpop.permute.xlu0 %743
        %745 = vrot.lane.b32.xlu0 %v728, 112
        %v746 = vpop.permute.xlu0 %745
        %v747 = vsel %vm620, %v736, %v738
        %v748 = vsel %vm620, %v738, %v740
        %v749 = vsel %vm620, %v742, %v744
        %v750 = vsel %vm620, %v744, %v746
        %v757 = vadd.f32 %v709, %v747
        %v758 = vadd.f32 %v710, %v748
        %v759 = vadd.f32 %v711, %v740
        %v760 = vadd.f32 %v712, %v749
        %v761 = vadd.f32 %v713, %v750
        %v762 = vadd.f32 %v714, %v746
        %763 = vset.pattern.permute.xlu0 7
        %764 = vperm.xlu0 %763, %v571
        %v765 = vpop.permute.xlu0 %764
        %767 = vset.pattern.permute.xlu0 7
        %768 = vperm.xlu0 %767, %v572
        %v769 = vpop.permute.xlu0 %768
        %v771 = vmul.f32 %v565, %v765
        %v772 = vmul.f32 %v566, %v765
        %v773 = vmul.f32 %v567, %v765
        %v774 = vmul.f32 %v568, %v769
        %v775 = vmul.f32 %v569, %v769
        %v776 = vmul.f32 %v570, %v769
        %783 = vrot.lane.b32.xlu0 %v771, 96
        %v784 = vpop.permute.xlu0 %783
        %785 = vrot.lane.b32.xlu0 %v772, 96
        %v786 = vpop.permute.xlu0 %785
        %787 = vrot.lane.b32.xlu0 %v773, 96
        %v788 = vpop.permute.xlu0 %787
        %789 = vrot.lane.b32.xlu0 %v774, 96
        %v790 = vpop.permute.xlu0 %789
        %791 = vrot.lane.b32.xlu0 %v775, 96
        %v792 = vpop.permute.xlu0 %791
        %793 = vrot.lane.b32.xlu0 %v776, 96
        %v794 = vpop.permute.xlu0 %793
        %v795 = vsel %vm665, %v784, %v786
        %v796 = vsel %vm665, %v786, %v788
        %v797 = vsel %vm665, %v790, %v792
        %v798 = vsel %vm665, %v792, %v794
        %v805 = vadd.f32 %v757, %v795
        %v806 = vadd.f32 %v758, %v796
        %v807 = vadd.f32 %v759, %v788
        %v808 = vadd.f32 %v760, %v797
        %v809 = vadd.f32 %v761, %v798
        %v810 = vadd.f32 %v762, %v794
        %817 = vrot.lane.b32.xlu0 %v805, 127
        %v818 = vpop.permute.xlu0 %817
        %819 = vrot.lane.b32.xlu0 %v806, 127
        %v820 = vpop.permute.xlu0 %819
        %821 = vrot.lane.b32.xlu0 %v807, 127
        %v822 = vpop.permute.xlu0 %821
        %823 = vrot.lane.b32.xlu0 %v808, 127
        %v824 = vpop.permute.xlu0 %823
        %825 = vrot.lane.b32.xlu0 %v809, 127
        %v826 = vpop.permute.xlu0 %825
        %827 = vrot.lane.b32.xlu0 %v810, 127
        %v828 = vpop.permute.xlu0 %827
        %vm829 = vcmask 1039360
        %v830 = vsel %vm829, %v818, %v820
        %v831 = vsel %vm829, %v820, %v822
        %v832 = vsel %vm829, %v824, %v826
        %v833 = vsel %vm829, %v826, %v828
        %v838 = vadd.f32 %v697, %v830
        %v839 = vadd.f32 %v698, %v831
        %v840 = vadd.f32 %v699, %v832
        %v841 = vadd.f32 %v700, %v833
        %842 = vset.pattern.permute.xlu0 2
        %843 = vperm.xlu0 %842, %v571
        %v844 = vpop.permute.xlu0 %843
        %846 = vset.pattern.permute.xlu0 2
        %847 = vperm.xlu0 %846, %v572
        %v848 = vpop.permute.xlu0 %847
        %v850 = vmul.f32 %v565, %v844
        %v851 = vmul.f32 %v566, %v844
        %v852 = vmul.f32 %v567, %v844
        %v853 = vmul.f32 %v568, %v848
        %v854 = vmul.f32 %v569, %v848
        %v855 = vmul.f32 %v570, %v848
        %856 = vset.pattern.permute.xlu0 5
        %857 = vperm.xlu0 %856, %v571
        %v858 = vpop.permute.xlu0 %857
        %860 = vset.pattern.permute.xlu0 5
        %861 = vperm.xlu0 %860, %v572
        %v862 = vpop.permute.xlu0 %861
        %v864 = vmul.f32 %v565, %v858
        %v865 = vmul.f32 %v566, %v858
        %v866 = vmul.f32 %v567, %v858
        %v867 = vmul.f32 %v568, %v862
        %v868 = vmul.f32 %v569, %v862
        %v869 = vmul.f32 %v570, %v862
        %876 = vrot.lane.b32.xlu0 %v864, 112
        %v877 = vpop.permute.xlu0 %876
        %878 = vrot.lane.b32.xlu0 %v865, 112
        %v879 = vpop.permute.xlu0 %878
        %880 = vrot.lane.b32.xlu0 %v866, 112
        %v881 = vpop.permute.xlu0 %880
        %882 = vrot.lane.b32.xlu0 %v867, 112
        %v883 = vpop.permute.xlu0 %882
        %884 = vrot.lane.b32.xlu0 %v868, 112
        %v885 = vpop.permute.xlu0 %884
        %886 = vrot.lane.b32.xlu0 %v869, 112
        %v887 = vpop.permute.xlu0 %886
        %v888 = vsel %vm620, %v877, %v879
        %v889 = vsel %vm620, %v879, %v881
        %v890 = vsel %vm620, %v883, %v885
        %v891 = vsel %vm620, %v885, %v887
        %v898 = vadd.f32 %v850, %v888
        %v899 = vadd.f32 %v851, %v889
        %v900 = vadd.f32 %v852, %v881
        %v901 = vadd.f32 %v853, %v890
        %v902 = vadd.f32 %v854, %v891
        %v903 = vadd.f32 %v855, %v887
        %904 = vset.pattern.permute.xlu0 8
        %905 = vperm.xlu0 %904, %v571
        %v906 = vpop.permute.xlu0 %905
        %908 = vset.pattern.permute.xlu0 8
        %909 = vperm.xlu0 %908, %v572
        %v910 = vpop.permute.xlu0 %909
        %v912 = vmul.f32 %v565, %v906
        %v913 = vmul.f32 %v566, %v906
        %v914 = vmul.f32 %v567, %v906
        %v915 = vmul.f32 %v568, %v910
        %v916 = vmul.f32 %v569, %v910
        %v917 = vmul.f32 %v570, %v910
        %924 = vrot.lane.b32.xlu0 %v912, 96
        %v925 = vpop.permute.xlu0 %924
        %926 = vrot.lane.b32.xlu0 %v913, 96
        %v927 = vpop.permute.xlu0 %926
        %928 = vrot.lane.b32.xlu0 %v914, 96
        %v929 = vpop.permute.xlu0 %928
        %930 = vrot.lane.b32.xlu0 %v915, 96
        %v931 = vpop.permute.xlu0 %930
        %932 = vrot.lane.b32.xlu0 %v916, 96
        %v933 = vpop.permute.xlu0 %932
        %934 = vrot.lane.b32.xlu0 %v917, 96
        %v935 = vpop.permute.xlu0 %934
        %v936 = vsel %vm665, %v925, %v927
        %v937 = vsel %vm665, %v927, %v929
        %v938 = vsel %vm665, %v931, %v933
        %v939 = vsel %vm665, %v933, %v935
        %v946 = vadd.f32 %v898, %v936
        %v947 = vadd.f32 %v899, %v937
        %v948 = vadd.f32 %v900, %v929
        %v949 = vadd.f32 %v901, %v938
        %v950 = vadd.f32 %v902, %v939
        %v951 = vadd.f32 %v903, %v935
        %v952 = vlaneseq
        %v953 = vshrl.u32 %v952, 7
        %v954 = vsub.s32 2, %v953
        %v955 = vrot.slane %v573, %v954
        %v956 = vlaneseq
        %v957 = vshrl.u32 %v956, 7
        %v958 = vsub.s32 6, %v957
        %v959 = vrot.slane %v573, %v958
        %v962 = vlaneseq
        %v963 = vshrl.u32 %v962, 7
        %v964 = vsub.s32 2, %v963
        %v965 = vrot.slane %v955, %v964
        %v966 = vlaneseq
        %v967 = vshrl.u32 %v966, 7
        %v968 = vsub.s32 2, %v967
        %v969 = vrot.slane %v959, %v968
        %972 = vrot.lane.b32.xlu0 %v965, 2
        %v973 = vpop.permute.xlu0 %972
        %974 = vrot.lane.b32.xlu0 %v969, 2
        %v975 = vpop.permute.xlu0 %974
        %vm976 = vcmask 15360
        %v977 = vsel %vm976, %v973, %v975
        %v981 = vmul.f32 %v946, %v973
        %v982 = vmul.f32 %v947, %v977
        %v983 = vmul.f32 %v948, %v975
        %v984 = vmul.f32 %v949, %v973
        %v985 = vmul.f32 %v950, %v977
        %v986 = vmul.f32 %v951, %v975
        %993 = vrot.lane.b32.xlu0 %v981, 126
        %v994 = vpop.permute.xlu0 %993
        %995 = vrot.lane.b32.xlu0 %v982, 126
        %v996 = vpop.permute.xlu0 %995
        %997 = vrot.lane.b32.xlu0 %v983, 126
        %v998 = vpop.permute.xlu0 %997
        %999 = vrot.lane.b32.xlu0 %v984, 126
        %v1000 = vpop.permute.xlu0 %999
        %1001 = vrot.lane.b32.xlu0 %v985, 126
        %v1002 = vpop.permute.xlu0 %1001
        %1003 = vrot.lane.b32.xlu0 %v986, 126
        %v1004 = vpop.permute.xlu0 %1003
        %vm1005 = vcmask 1031168
        %v1006 = vsel %vm1005, %v994, %v996
        %v1007 = vsel %vm1005, %v996, %v998
        %v1008 = vsel %vm1005, %v1000, %v1002
        %v1009 = vsel %vm1005, %v1002, %v1004
        %v1014 = vadd.f32 %v838, %v1006
        %v1015 = vadd.f32 %v839, %v1007
        %v1016 = vadd.f32 %v840, %v1008
        %v1017 = vadd.f32 %v841, %v1009
        %v1018 = vld [vmem:[%s4] sm:$0xff]
        %v1019 = vld [vmem:[%s4 + $0x8] sm:$0xff]
        %1021 = vset.pattern.permute.xlu0 0
        %1022 = vperm.xlu0 %1021, %v1018
        %v1023 = vpop.permute.xlu0 %1022
        %1026 = vset.pattern.permute.xlu0 0
        %1027 = vperm.xlu0 %1026, %v1019
        %v1028 = vpop.permute.xlu0 %1027
        %v1030 = vadd.f32 %v1014, %v1023
        %v1031 = vadd.f32 %v1015, %v1023
        %v1032 = vadd.f32 %v1016, %v1028
        %v1033 = vadd.f32 %v1017, %v1028
        %v1034 = vadd.f32 %v1030, %v1031
        %1035 = vadd.xlane.f32.xlu0 %v1034
        %v1036 = vpop.xlane.xlu0 %1035
        %v1037 = vadd.f32 %v1032, %v1033
        %1038 = vadd.xlane.f32.xlu0 %v1037
        %v1039 = vpop.xlane.xlu0 %1038
        %v1040 = vmul.f32 %v1036, 0.00390625
        %v1041 = vmul.f32 %v1039, 0.00390625
        %v1042 = vld [vmem:[%s6] sm:$0xf]
        %v1043 = vld [vmem:[%s7] sm:$0xf]
        %vm1044 = vcmask 130048
        %v1046 = vsel %vm1044, %v1042, 0
        %1048 = vmatprep.subr.mxu0 0.0
        %1049 = vmatpush1.msra.mxu0 %v1040
        %1050 = vmatprep.subr.mxu0 0.0
        %1051 = vmatpush1.msra.mxu0 %v1041
        %1052 = vmatprep.subr.mxu0 0.0
        %1053 = vmatpush1.msra.mxu0 0.0
        %1054 = vmatprep.subr.mxu0 0.0
        %1055 = vmatpush1.msra.mxu0 0.0
        %1056 = vmatprep.subr.mxu0 0.0
        %1057 = vmatpush1.msra.mxu0 0.0
        %1058 = vmatprep.subr.mxu0 0.0
        %1059 = vmatpush1.msra.mxu0 0.0
        %1060 = vmatprep.subr.mxu0 0.0
        %1061 = vmatpush1.msra.mxu0 0.0
        %1062 = vmatprep.subr.mxu0 0.0
        %1063 = vmatpush1.msra.mxu0 0.0
        %1064 = vmatprep.subr.mxu0 0.0
        %1065 = vmatpush1.msra.mxu0 0.0
        %1066 = vmatprep.subr.mxu0 0.0
        %1067 = vmatpush1.msra.mxu0 0.0
        %1068 = vmatprep.subr.mxu0 0.0
        %1069 = vmatpush1.msra.mxu0 0.0
        %1070 = vmatprep.subr.mxu0 0.0
        %1071 = vmatpush1.msra.mxu0 0.0
        %1072 = vmatprep.subr.mxu0 0.0
        %1073 = vmatpush1.msra.mxu0 0.0
        %1074 = vmatprep.subr.mxu0 0.0
        %1075 = vmatpush1.msra.mxu0 0.0
        %1076 = vmatprep.subr.mxu0 0.0
        %1077 = vmatpush1.msra.mxu0 0.0
        %1078 = vmatprep.subr.mxu0 0.0
        %1079 = vmatpush1.msra.mxu0 0.0
        %1080 = vmatprep.subr.mxu0 0.0
        %1081 = vmatpush1.msra.mxu0 0.0
        %1082 = vmatprep.subr.mxu0 0.0
        %1083 = vmatpush1.msra.mxu0 0.0
        %1084 = vmatprep.subr.mxu0 0.0
        %1085 = vmatpush1.msra.mxu0 0.0
        %1086 = vmatprep.subr.mxu0 0.0
        %1087 = vmatpush1.msra.mxu0 0.0
        %1088 = vmatprep.subr.mxu0 0.0
        %1089 = vmatpush1.msra.mxu0 0.0
        %1090 = vmatprep.subr.mxu0 0.0
        %1091 = vmatpush1.msra.mxu0 0.0
        %1092 = vmatprep.subr.mxu0 0.0
        %1093 = vmatpush1.msra.mxu0 0.0
        %1094 = vmatprep.subr.mxu0 0.0
        %1095 = vmatpush1.msra.mxu0 0.0
        %1096 = vmatprep.subr.mxu0 0.0
        %1097 = vmatpush1.msra.mxu0 0.0
        %1098 = vmatprep.subr.mxu0 0.0
        %1099 = vmatpush1.msra.mxu0 0.0
        %1100 = vmatprep.subr.mxu0 0.0
        %1101 = vmatpush1.msra.mxu0 0.0
        %1102 = vmatprep.subr.mxu0 0.0
        %1103 = vmatpush1.msra.mxu0 0.0
        %1104 = vmatprep.subr.mxu0 0.0
        %1105 = vmatpush1.msra.mxu0 0.0
        %1106 = vmatprep.subr.mxu0 0.0
        %1107 = vmatpush1.msra.mxu0 0.0
        %1108 = vmatprep.subr.mxu0 0.0
        %1109 = vmatpush1.msra.mxu0 0.0
        %1110 = vmatprep.subr.mxu0 0.0
        %1111 = vmatpush1.msra.mxu0 0.0
        %1112 = vmatprep.mubr.f32.mxu0 0.0
        %1113 = vmatmul.mubr.f32.gmra.mrb[0].mxu0 %v1046
        %v1114 = vpop.f32.mrb[0].mxu0
        %v1115 = vadd.f32 %v1043, %v1114
        %v1116 = vpop.f32.mrb[0].mxu0
        %1117 = vdwg.mxu0
        %v1118 = vmax.f32 %v1115, 0.0
        %v1119 = vld [vmem:[%s8] sm:$0xff]
        %v1120 = vld [vmem:[%s8 + $0x8] sm:$0xff]
        %v1121 = vld [vmem:[%s9] sm:$0xff]
        %v1122 = vld [vmem:[%s9 + $0x8] sm:$0xff]
        %vm1123 = vcmask 31744
        %v1125 = vsel %vm1123, %v1119, 0
        %v1128 = vsel %vm1123, %v1120, 0
        %vm1130 = vcmask 1043456
        %v1132 = vsel %vm1130, %v1118, 0
        %1134 = vmatprep.subr.mxu0 0.0
        %1135 = vmatpush1.msra.mxu0 %v1132
        %1136 = vmatprep.subr.mxu0 0.0
        %1137 = vmatpush1.msra.mxu0 0.0
        %1138 = vmatprep.subr.mxu0 0.0
        %1139 = vmatpush1.msra.mxu0 0.0
        %1140 = vmatprep.subr.mxu0 0.0
        %1141 = vmatpush1.msra.mxu0 0.0
        %1142 = vmatprep.subr.mxu0 0.0
        %1143 = vmatpush1.msra.mxu0 0.0
        %1144 = vmatprep.subr.mxu0 0.0
        %1145 = vmatpush1.msra.mxu0 0.0
        %1146 = vmatprep.subr.mxu0 0.0
        %1147 = vmatpush1.msra.mxu0 0.0
        %1148 = vmatprep.subr.mxu0 0.0
        %1149 = vmatpush1.msra.mxu0 0.0
        %1150 = vmatprep.subr.mxu0 0.0
        %1151 = vmatpush1.msra.mxu0 0.0
        %1152 = vmatprep.subr.mxu0 0.0
        %1153 = vmatpush1.msra.mxu0 0.0
        %1154 = vmatprep.subr.mxu0 0.0
        %1155 = vmatpush1.msra.mxu0 0.0
        %1156 = vmatprep.subr.mxu0 0.0
        %1157 = vmatpush1.msra.mxu0 0.0
        %1158 = vmatprep.subr.mxu0 0.0
        %1159 = vmatpush1.msra.mxu0 0.0
        %1160 = vmatprep.subr.mxu0 0.0
        %1161 = vmatpush1.msra.mxu0 0.0
        %1162 = vmatprep.subr.mxu0 0.0
        %1163 = vmatpush1.msra.mxu0 0.0
        %1164 = vmatprep.subr.mxu0 0.0
        %1165 = vmatpush1.msra.mxu0 0.0
        %1166 = vmatprep.subr.mxu0 0.0
        %1167 = vmatpush1.msra.mxu0 0.0
        %1168 = vmatprep.subr.mxu0 0.0
        %1169 = vmatpush1.msra.mxu0 0.0
        %1170 = vmatprep.subr.mxu0 0.0
        %1171 = vmatpush1.msra.mxu0 0.0
        %1172 = vmatprep.subr.mxu0 0.0
        %1173 = vmatpush1.msra.mxu0 0.0
        %1174 = vmatprep.subr.mxu0 0.0
        %1175 = vmatpush1.msra.mxu0 0.0
        %1176 = vmatprep.subr.mxu0 0.0
        %1177 = vmatpush1.msra.mxu0 0.0
        %1178 = vmatprep.subr.mxu0 0.0
        %1179 = vmatpush1.msra.mxu0 0.0
        %1180 = vmatprep.subr.mxu0 0.0
        %1181 = vmatpush1.msra.mxu0 0.0
        %1182 = vmatprep.subr.mxu0 0.0
        %1183 = vmatpush1.msra.mxu0 0.0
        %1184 = vmatprep.subr.mxu0 0.0
        %1185 = vmatpush1.msra.mxu0 0.0
        %1186 = vmatprep.subr.mxu0 0.0
        %1187 = vmatpush1.msra.mxu0 0.0
        %1188 = vmatprep.subr.mxu0 0.0
        %1189 = vmatpush1.msra.mxu0 0.0
        %1190 = vmatprep.subr.mxu0 0.0
        %1191 = vmatpush1.msra.mxu0 0.0
        %1192 = vmatprep.subr.mxu0 0.0
        %1193 = vmatpush1.msra.mxu0 0.0
        %1194 = vmatprep.subr.mxu0 0.0
        %1195 = vmatpush1.msra.mxu0 0.0
        %1196 = vmatprep.subr.mxu0 0.0
        %1197 = vmatpush1.msra.mxu0 0.0
        %1198 = vmatprep.mubr.f32.mxu0 0.0
        %1199 = vmatmul.mubr.f32.gmra.mrb[0].mxu0 %v1125
        %v1200 = vpop.f32.mrb[0].mxu0
        %v1201 = vadd.f32 %v1121, %v1200
        %v1202 = vpop.f32.mrb[0].mxu0
        %1203 = vmatprep.mubr.f32.mxu0 0.0
        %1204 = vmatmul.mubr.f32.gmra.mrb[0].mxu0 %v1128
        %v1205 = vpop.f32.mrb[0].mxu0
        %v1206 = vadd.f32 %v1122, %v1205
        %v1207 = vpop.f32.mrb[0].mxu0
        %1208 = vdwg.mxu0
        %v1209 = vmul.f32 %v1201, 0.2
        %v1210 = vmul.f32 %v1206, 0.2
        %v1211 = vadd.f32 %v1209, 0.5
        %v1212 = vadd.f32 %v1210, 0.5
        %v1213 = vmax.f32 %v1211, 0.0
        %v1214 = vmax.f32 %v1212, 0.0
        %v1215 = vmin.f32 %v1213, 1.0
        %v1216 = vmin.f32 %v1214, 1.0
        %1218 = vset.pattern.permute.xlu0 0
        %1219 = vperm.xlu0 %1218, %v1215
        %v1220 = vpop.permute.xlu0 %1219
        %1223 = vset.pattern.permute.xlu0 0
        %1224 = vperm.xlu0 %1223, %v1216
        %v1225 = vpop.permute.xlu0 %1224
        %v1227 = vmul.f32 %v1030, %v1220
        %v1228 = vmul.f32 %v1031, %v1220
        %v1229 = vmul.f32 %v1032, %v1225
        %v1230 = vmul.f32 %v1033, %v1225
        %v1231 = vld [vmem:[%s10] sm:$0xff]
        %v1232 = vld [vmem:[%s11] sm:$0xff]
        %1234 = vset.pattern.permute.xlu0 0
        %1235 = vperm.xlu0 %1234, %v1232
        %v1236 = vpop.permute.xlu0 %1235
        %v1239 = vsel %vm1044, %v1231, 0
        %1241 = vmatprep.subr.mxu0 %v1228
        %1242 = vmatpush1.msra.mxu0 %v1227
        %1243 = vmatprep.subr.mxu0 %v1230
        %1244 = vmatpush1.msra.mxu0 %v1229
        %1245 = vmatprep.subr.mxu0 0.0
        %1246 = vmatpush1.msra.mxu0 0.0
        %1247 = vmatprep.subr.mxu0 0.0
        %1248 = vmatpush1.msra.mxu0 0.0
        %1249 = vmatprep.subr.mxu0 0.0
        %1250 = vmatpush1.msra.mxu0 0.0
        %1251 = vmatprep.subr.mxu0 0.0
        %1252 = vmatpush1.msra.mxu0 0.0
        %1253 = vmatprep.subr.mxu0 0.0
        %1254 = vmatpush1.msra.mxu0 0.0
        %1255 = vmatprep.subr.mxu0 0.0
        %1256 = vmatpush1.msra.mxu0 0.0
        %1257 = vmatprep.subr.mxu0 0.0
        %1258 = vmatpush1.msra.mxu0 0.0
        %1259 = vmatprep.subr.mxu0 0.0
        %1260 = vmatpush1.msra.mxu0 0.0
        %1261 = vmatprep.subr.mxu0 0.0
        %1262 = vmatpush1.msra.mxu0 0.0
        %1263 = vmatprep.subr.mxu0 0.0
        %1264 = vmatpush1.msra.mxu0 0.0
        %1265 = vmatprep.subr.mxu0 0.0
        %1266 = vmatpush1.msra.mxu0 0.0
        %1267 = vmatprep.subr.mxu0 0.0
        %1268 = vmatpush1.msra.mxu0 0.0
        %1269 = vmatprep.subr.mxu0 0.0
        %1270 = vmatpush1.msra.mxu0 0.0
        %1271 = vmatprep.subr.mxu0 0.0
        %1272 = vmatpush1.msra.mxu0 0.0
        %1273 = vmatprep.subr.mxu0 0.0
        %1274 = vmatpush1.msra.mxu0 0.0
        %1275 = vmatprep.subr.mxu0 0.0
        %1276 = vmatpush1.msra.mxu0 0.0
        %1277 = vmatprep.subr.mxu0 0.0
        %1278 = vmatpush1.msra.mxu0 0.0
        %1279 = vmatprep.subr.mxu0 0.0
        %1280 = vmatpush1.msra.mxu0 0.0
        %1281 = vmatprep.subr.mxu0 0.0
        %1282 = vmatpush1.msra.mxu0 0.0
        %1283 = vmatprep.subr.mxu0 0.0
        %1284 = vmatpush1.msra.mxu0 0.0
        %1285 = vmatprep.subr.mxu0 0.0
        %1286 = vmatpush1.msra.mxu0 0.0
        %1287 = vmatprep.subr.mxu0 0.0
        %1288 = vmatpush1.msra.mxu0 0.0
        %1289 = vmatprep.subr.mxu0 0.0
        %1290 = vmatpush1.msra.mxu0 0.0
        %1291 = vmatprep.subr.mxu0 0.0
        %1292 = vmatpush1.msra.mxu0 0.0
        %1293 = vmatprep.subr.mxu0 0.0
        %1294 = vmatpush1.msra.mxu0 0.0
        %1295 = vmatprep.subr.mxu0 0.0
        %1296 = vmatpush1.msra.mxu0 0.0
        %1297 = vmatprep.subr.mxu0 0.0
        %1298 = vmatpush1.msra.mxu0 0.0
        %1299 = vmatprep.subr.mxu0 0.0
        %1300 = vmatpush1.msra.mxu0 0.0
        %1301 = vmatprep.subr.mxu0 0.0
        %1302 = vmatpush1.msra.mxu0 0.0
        %1303 = vmatprep.subr.mxu0 0.0
        %1304 = vmatpush1.msra.mxu0 0.0
        %1305 = vmatprep.mubr.f32.mxu0 0.0
        %1306 = vmatmul.mubr.f32.gmra.mrb[0].mxu0 %v1239
        %v1307 = vpop.f32.mrb[0].mxu0
        %v1308 = vadd.f32 %v1236, %v1307
        %v1309 = vpop.f32.mrb[0].mxu0
        %v1310 = vadd.f32 %v1236, %v1309
        %1311 = vdwg.mxu0
        %v1312 = vadd.f32 %v1308, 3.0
        %v1313 = vadd.f32 %v1310, 3.0
        %v1314 = vmax.f32 %v1312, 0.0
        %v1315 = vmax.f32 %v1313, 0.0
        %v1316 = vmin.f32 %v1314, 6.0
        %v1317 = vmin.f32 %v1315, 6.0
        %v1318 = vmul.f32 %v1316, 0.16666667
        %v1319 = vmul.f32 %v1317, 0.16666667
        %v1320 = vmul.f32 %v1318, %v1308
        %v1321 = vmul.f32 %v1319, %v1310
        %v1322 = vld [vmem:[%s411] sm:$0xff]
        %v1323 = vld [vmem:[%s411 + $0x8] sm:$0xff]
        %v1324 = vadd.f32 %v1320, %v1322
        %v1325 = vadd.f32 %v1321, %v1323
        %1326 = vst [vmem:[%s406] sm:$0xff] %v1324
        %1327 = vst [vmem:[%s406 + $0x8] sm:$0xff] %v1325
        %s1328 = sand.u32 %s291, 1
        %s1329 = scalar_lea.sflag [#allocation4], %s1328
        %s1330 = sand.u32 %s291, 1
        %s1331 = smul.addr %s1330, 16
        %s1332 = scalar_lea.vmem [#allocation3], %s1331
        // Predicated region
        $region69: #{tpu_custom_call.1} parent=67 // pred_check
          %p1333 = pneg %p301
        $region70: #{tpu_custom_call.1} parent=67 // pred_check_branch
          %1335 = sbr.rel (%p1333) target = $region72
        $region71: #{tpu_custom_call.1} parent=67 // pred_region
          %s1337 = ssub.s32 256, 256
          %1338 = vsyncadd %s1329, %s1337
          %s1339 = smul.addr %s26, 2
          %s1340 = smul.addr %s1339, 128
          %s1341 = scalar_lea.hbm %s12, %s1340
          %s1343 = sshll.u32 %s1332, 4
          %s1344 = int_to_ptr.vmem [resolvable:$true] %s1343
          %1346 = dma.vmem_to_hbm [thread:$0]  %s1344, 256, %s1341, %s1329
        $region72: #{tpu_custom_call.1} parent=67 // pred_fallthru
          _
      $region68: #{tpu_custom_call.1} parent=5 // pred_fallthru
        _
      %p1347 = scmp.le.s32.totalorder 2, %s21
      // Predicated region
      $region73: #{tpu_custom_call.1} parent=5 // pred_check
        %p1348 = pneg %p1347
      $region74: #{tpu_custom_call.1} parent=5 // pred_check_branch
        %1350 = sbr.rel (%p1348) target = $region76
      $region75: #{tpu_custom_call.1} parent=5 // pred_region
        %s1351 = ssub.s32 %s21, 2
        // Predicated region
        $region77: #{tpu_custom_call.1} parent=75 // pred_check
          %p1352 = pneg %p307
        $region78: #{tpu_custom_call.1} parent=75 // pred_check_branch
          %1354 = sbr.rel (%p1352) target = $region80
        $region79: #{tpu_custom_call.1} parent=75 // pred_region
          %s1355 = sand.u32 %s292, 1
          %s1356 = scalar_lea.sflag [#allocation4], %s1355
          %s1357 = sand.u32 %s292, 1
          %s1358 = smul.addr %s1357, 16
          %s1359 = scalar_lea.vmem [#allocation3], %s1358
          %1360 = dma.done %s1356, 256
        $region80: #{tpu_custom_call.1} parent=75 // pred_fallthru
          _
      $region76: #{tpu_custom_call.1} parent=5 // pred_fallthru
        _
    $region6: #{tpu_custom_call.1} parent=1 // loop_footer
      %s25 = sadd.s32 1, %s21
    $region7: #{tpu_custom_call.1} parent=1 // loop_footer_branch
      %20 = sbr.rel target = $region3
    $region8: #{tpu_custom_call.1} parent=1 // loop_exit
      _
    %1361 = vsyncpa [#allocation4], 1
    %s1362 = scalar_lea.sflag [#allocation4], 1
    %1363 = vsyncpa %s1362, 1

</llo_original>
